<compile_context>
chip_gen: v6e
topology: v6e:2x2x1
jax: 0.10.0
libtpu: 0.0.40
codegen_flags: <defaults>
</compile_context>

<pallas_src>
import functools

import jax
import jax.numpy as jnp
from jax.experimental import pallas as pl
from jax.experimental.pallas import tpu as pltpu

_UNROLL_T_MAX = 32  # fully unroll the recurrence for short sequences


def _encoder_kernel(L, T, Bp, H, mm_dtype, *refs):
    """Linear + stacked LSTM, processed layer-by-layer.

    refs layout:
      inputs : x [T*Bp, D] (mm_dtype), w_lin [D, E] (mm_dtype), b_lin [1, E] (f32),
               per layer l: w_ih [in_l, 4H] (mm_dtype), w_hh [H, 4H] (mm_dtype),
                            b [1, 4H] (f32, = b_ih + b_hh, gate order i,f,o,g)
      outputs: h_out [L, Bp, H] f32, c_out [L, Bp, H] f32
      scratch: xproj [T*Bp, 4H] f32, seq [T*Bp, H] mm_dtype
    """
    x_ref, wl_ref, bl_ref = refs[0:3]
    layer_refs = refs[3:3 + 3 * L]
    h_out_ref, c_out_ref = refs[3 + 3 * L:3 + 3 * L + 2]
    xproj_ref, seq_ref = refs[3 + 3 * L + 2:]

    # ---- Embedding linear: one big [T*Bp, D] @ [D, E] matmul on the MXU. ----
    emb = jnp.dot(x_ref[...].astype(mm_dtype), wl_ref[...],
                  preferred_element_type=jnp.float32) + bl_ref[...]

    layer_in = emb  # [T*Bp, in_l]; later layers read the previous layer's sequence
    for l in range(L):
        w_ih = layer_refs[3 * l + 0][...]
        w_hh = layer_refs[3 * l + 1][...]
        b = layer_refs[3 * l + 2][...]  # [1, 4H], bias pair pre-summed in wrapper

        # Batched input-to-hidden projection for ALL timesteps at once, bias
        # folded in. This hoists T tiny matmuls out of the serial loop.
        xproj_ref[...] = jnp.dot(layer_in.astype(mm_dtype), w_ih,
                                 preferred_element_type=jnp.float32) + b

        write_seq = l < L - 1  # the last layer's sequence is never consumed

        def step(t, carry, *, _w_hh=w_hh, _write_seq=write_seq):
            h, c = carry
            if isinstance(t, int):
                row = t * Bp                      # static (unrolled path)
            else:
                row = pl.multiple_of(t * Bp, Bp)  # sublane-aligned dynamic slice
            gates = xproj_ref[pl.ds(row, Bp), :] + jnp.dot(
                h.astype(mm_dtype), _w_hh, preferred_element_type=jnp.float32)
            # Gate order (i, f, o, g): one fused sigmoid over the first 3H lanes,
            # one tanh over the last H.
            sig = jax.nn.sigmoid(gates[:, :3 * H])
            i_g = sig[:, 0:H]
            f_g = sig[:, H:2 * H]
            o_g = sig[:, 2 * H:3 * H]
            g_g = jnp.tanh(gates[:, 3 * H:])
            c_new = f_g * c + i_g * g_g
            h_new = o_g * jnp.tanh(c_new)
            if _write_seq:
                seq_ref[pl.ds(row, Bp), :] = h_new.astype(seq_ref.dtype)
            return h_new, c_new

        h_fin = jnp.zeros((Bp, H), jnp.float32)
        c_fin = jnp.zeros((Bp, H), jnp.float32)
        if T <= _UNROLL_T_MAX:
            # Full unroll: the scheduler can overlap step t's EUP (sigmoid/tanh)
            # work with step t+1's recurrent matmul.
            for t in range(T):
                h_fin, c_fin = step(t, (h_fin, c_fin))
        else:
            h_fin, c_fin = jax.lax.fori_loop(0, T, step, (h_fin, c_fin))

        h_out_ref[l, :, :] = h_fin
        c_out_ref[l, :, :] = c_fin
        if write_seq:
            layer_in = seq_ref[...]  # next layer's input: full output sequence


def _reorder_gates(w, H):
    """Permute the trailing 4H gate axis from PyTorch (i, f, g, o) to (i, f, o, g)."""
    return jnp.concatenate(
        [w[..., :2 * H], w[..., 3 * H:4 * H], w[..., 2 * H:3 * H]], axis=-1)


def encoder_forward(src, w_lin, b_lin, layer_params, hid_dim,
                    mm_dtype=jnp.bfloat16):
    """src: [B, T, input_dim] (batch_first, like the PyTorch module).

    Weight layout: all matrices are pre-transposed to [in_features, out_features].
    Returns (hidden, cell), each [n_layers, B, hid_dim] (PyTorch final states).
    """
    B, T, D = src.shape
    E = w_lin.shape[1]
    H = hid_dim
    G = 4 * H
    L = len(layer_params)
    Bp = ((B + 7) // 8) * 8  # pad batch to a full sublane tile

    # Time-major, batch-padded, flattened activation stream: [T*Bp, D].
    x = jnp.transpose(src, (1, 0, 2))
    x = jnp.pad(x, ((0, 0), (0, Bp - B), (0, 0)))
    x2d = x.reshape(T * Bp, D).astype(mm_dtype)

    w_lin_c = w_lin.astype(mm_dtype)
    b_lin_f = b_lin.astype(jnp.float32)

    flat = []
    in_dims = []
    for (w_ih, w_hh, b_ih, b_hh) in layer_params:
        in_dims.append(w_ih.shape[0])
        flat.append(_reorder_gates(w_ih, H).astype(mm_dtype))
        flat.append(_reorder_gates(w_hh, H).astype(mm_dtype))
        flat.append(_reorder_gates(b_ih + b_hh, H).astype(jnp.float32))

    operands = [x2d, w_lin_c, b_lin_f] + flat
    n_in = len(operands)

    # Advisory cost estimate for the XLA scheduler.
    flops = 2 * T * Bp * D * E
    for in_l in in_dims:
        flops += 2 * T * Bp * in_l * G   # batched input-to-hidden projection
        flops += 2 * T * Bp * H * G      # recurrent h @ w_hh
    transcendentals = 6 * T * Bp * H * L
    bytes_accessed = sum(int(a.size) * a.dtype.itemsize for a in operands)
    bytes_accessed += 2 * L * Bp * H * 4

    kernel = functools.partial(_encoder_kernel, L, T, Bp, H, mm_dtype)

    hidden, cell = pl.pallas_call(
        kernel,
        out_shape=(jax.ShapeDtypeStruct((L, Bp, H), jnp.float32),
                   jax.ShapeDtypeStruct((L, Bp, H), jnp.float32)),
        in_specs=[pl.BlockSpec(memory_space=pltpu.MemorySpace.VMEM)] * n_in,
        out_specs=(pl.BlockSpec(memory_space=pltpu.MemorySpace.VMEM),
                   pl.BlockSpec(memory_space=pltpu.MemorySpace.VMEM)),
        scratch_shapes=[pltpu.VMEM((T * Bp, G), jnp.float32),
                        pltpu.VMEM((T * Bp, H), mm_dtype)],
        compiler_params=pltpu.CompilerParams(
            vmem_limit_bytes=32 * 1024 * 1024),
        cost_estimate=pl.CostEstimate(flops=flops,
                                      transcendentals=transcendentals,
                                      bytes_accessed=bytes_accessed),
    )(*operands)
    return hidden[:, :B, :], cell[:, :B, :]


def _reference(src, w_lin, b_lin, layer_params, H, mm_dtype=jnp.bfloat16):
    """Pure-JAX reference mirroring the kernel math (bf16 matmuls, f32 gates)."""
    B, T, _ = src.shape
    L = len(layer_params)

    def mm(a, b):
        return jnp.dot(a.astype(mm_dtype), b.astype(mm_dtype),
                       preferred_element_type=jnp.float32)

    emb = mm(src, w_lin) + b_lin[0]
    h = [jnp.zeros((B, H), jnp.float32) for _ in range(L)]
    c = [jnp.zeros((B, H), jnp.float32) for _ in range(L)]
    for t in range(T):
        inp = emb[:, t, :]
        for l in range(L):
            w_ih, w_hh, b_ih, b_hh = layer_params[l]
            gates = mm(inp, w_ih) + mm(h[l], w_hh) + b_ih[0] + b_hh[0]
            i_g = jax.nn.sigmoid(gates[:, :H])
            f_g = jax.nn.sigmoid(gates[:, H:2 * H])
            g_g = jnp.tanh(gates[:, 2 * H:3 * H])
            o_g = jax.nn.sigmoid(gates[:, 3 * H:])
            c[l] = f_g * c[l] + i_g * g_g
            h[l] = o_g * jnp.tanh(c[l])
            inp = h[l]
    return jnp.stack(h), jnp.stack(c)


if __name__ == "__main__":
    # Small shapes consistent with the module.
    B, T = 2, 8            # batch, sequence length
    input_dim = 16
    emb_dim = 32
    hid_dim = 32
    n_layers = 2           # dropout only matters between layers in training

    key = jax.random.PRNGKey(0)
    ks = jax.random.split(key, 3 + 4 * n_layers)
    k = 1.0 / jnp.sqrt(hid_dim)

    src = jax.random.normal(ks[0], (B, T, input_dim), dtype=jnp.float32)

    # Linear(input_dim, emb_dim): stored transposed as [input_dim, emb_dim].
    w_lin = jax.random.uniform(ks[1], (input_dim, emb_dim), jnp.float32, -k, k)
    b_lin = jax.random.uniform(ks[2], (1, emb_dim), jnp.float32, -k, k)

    # LSTM weights per layer (PyTorch shapes [4H, in] / [4H, H], transposed here,
    # gate order i, f, g, o along the 4H axis — reordering happens in the wrapper).
    layer_params = []
    for l in range(n_layers):
        in_dim = emb_dim if l == 0 else hid_dim
        kw = ks[3 + 4 * l: 3 + 4 * (l + 1)]
        w_ih = jax.random.uniform(kw[0], (in_dim, 4 * hid_dim), jnp.float32, -k, k)
        w_hh = jax.random.uniform(kw[1], (hid_dim, 4 * hid_dim), jnp.float32, -k, k)
        b_ih = jax.random.uniform(kw[2], (1, 4 * hid_dim), jnp.float32, -k, k)
        b_hh = jax.random.uniform(kw[3], (1, 4 * hid_dim), jnp.float32, -k, k)
        layer_params.append((w_ih, w_hh, b_ih, b_hh))

    hidden, cell = encoder_forward(src, w_lin, b_lin, layer_params, hid_dim)
    hidden, cell = jax.block_until_ready((hidden, cell))

    h_ref, c_ref = _reference(src, w_lin, b_lin, layer_params, hid_dim)
    assert hidden.shape == (n_layers, B, hid_dim)
    assert cell.shape == (n_layers, B, hid_dim)
    assert jnp.allclose(hidden, h_ref, atol=2e-3, rtol=2e-3), \
        float(jnp.max(jnp.abs(hidden - h_ref)))
    assert jnp.allclose(cell, c_ref, atol=2e-3, rtol=2e-3), \
        float(jnp.max(jnp.abs(cell - c_ref)))

    print("KERNEL_OK")
</pallas_src>

<mosaic_0001>
module attributes {stable_mosaic.version = 11 : i64} {
  func.func @_encoder_kernel(%arg0: memref<64x16xbf16, #tpu.memory_space<vmem>>, %arg1: memref<16x32xbf16, #tpu.memory_space<vmem>>, %arg2: memref<1x32xf32, #tpu.memory_space<vmem>>, %arg3: memref<32x128xbf16, #tpu.memory_space<vmem>>, %arg4: memref<32x128xbf16, #tpu.memory_space<vmem>>, %arg5: memref<1x128xf32, #tpu.memory_space<vmem>>, %arg6: memref<32x128xbf16, #tpu.memory_space<vmem>>, %arg7: memref<32x128xbf16, #tpu.memory_space<vmem>>, %arg8: memref<1x128xf32, #tpu.memory_space<vmem>>, %arg9: memref<2x8x32xf32, #tpu.memory_space<vmem>>, %arg10: memref<2x8x32xf32, #tpu.memory_space<vmem>>, %arg11: memref<64x128xf32, #tpu.memory_space<vmem>>, %arg12: memref<64x32xbf16, #tpu.memory_space<vmem>>) attributes {dimension_semantics = [], scalar_prefetch = 0 : i64, scratch_operands = 2 : i64, tpu.core_type = #tpu.core_type<tc>} {
    %c0 = arith.constant 0 : index
    %c0_0 = arith.constant 0 : index
    %0 = vector.load %arg0[%c0, %c0_0] : memref<64x16xbf16, #tpu.memory_space<vmem>>, vector<64x16xbf16>
    %c0_1 = arith.constant 0 : index
    %c0_2 = arith.constant 0 : index
    %1 = vector.load %arg1[%c0_1, %c0_2] : memref<16x32xbf16, #tpu.memory_space<vmem>>, vector<16x32xbf16>
    %cst = arith.constant dense<0.000000e+00> : vector<64x32xf32>
    %2 = tpu.matmul %0, %1, %cst {dimension_numbers = #tpu.dot_dimension_numbers<[1], [0], [0], [1], [0, 0, 1, 1], [], []>} : vector<64x16xbf16>, vector<16x32xbf16>, vector<64x32xf32> -> vector<64x32xf32>
    %c0_3 = arith.constant 0 : index
    %c0_4 = arith.constant 0 : index
    %3 = vector.load %arg2[%c0_3, %c0_4] : memref<1x32xf32, #tpu.memory_space<vmem>>, vector<1x32xf32>
    %4 = vector.broadcast %3 : vector<1x32xf32> to vector<64x32xf32>
    %5 = arith.addf %2, %4 : vector<64x32xf32>
    %c0_5 = arith.constant 0 : index
    %c0_6 = arith.constant 0 : index
    %6 = vector.load %arg3[%c0_5, %c0_6] : memref<32x128xbf16, #tpu.memory_space<vmem>>, vector<32x128xbf16>
    %c0_7 = arith.constant 0 : index
    %c0_8 = arith.constant 0 : index
    %7 = vector.load %arg4[%c0_7, %c0_8] : memref<32x128xbf16, #tpu.memory_space<vmem>>, vector<32x128xbf16>
    %c0_9 = arith.constant 0 : index
    %c0_10 = arith.constant 0 : index
    %8 = vector.load %arg5[%c0_9, %c0_10] : memref<1x128xf32, #tpu.memory_space<vmem>>, vector<1x128xf32>
    %9 = arith.truncf %5 : vector<64x32xf32> to vector<64x32xbf16>
    %cst_11 = arith.constant dense<0.000000e+00> : vector<64x128xf32>
    %10 = tpu.matmul %9, %6, %cst_11 {dimension_numbers = #tpu.dot_dimension_numbers<[1], [0], [0], [1], [0, 0, 1, 1], [], []>} : vector<64x32xbf16>, vector<32x128xbf16>, vector<64x128xf32> -> vector<64x128xf32>
    %11 = vector.broadcast %8 : vector<1x128xf32> to vector<64x128xf32>
    %12 = arith.addf %10, %11 : vector<64x128xf32>
    %c0_12 = arith.constant 0 : index
    %c0_13 = arith.constant 0 : index
    %13 = vector.load %arg11[%c0_12, %c0_13] : memref<64x128xf32, #tpu.memory_space<vmem>>, vector<64x128xf32>
    tpu.vector_store %arg11[%c0_12, %c0_13], %12 {strides = array<i32>} : memref<64x128xf32, #tpu.memory_space<vmem>>, vector<64x128xf32>,
    %cst_14 = arith.constant 0.000000e+00 : f32
    %14 = vector.broadcast %cst_14 : f32 to vector<8x32xf32>
    %cst_15 = arith.constant 0.000000e+00 : f32
    %15 = vector.broadcast %cst_15 : f32 to vector<8x32xf32>
    %c0_16 = arith.constant 0 : index
    %c0_17 = arith.constant 0 : index
    %16 = vector.load %arg11[%c0_16, %c0_17] : memref<64x128xf32, #tpu.memory_space<vmem>>, vector<8x128xf32>
    %17 = arith.truncf %14 : vector<8x32xf32> to vector<8x32xbf16>
    %cst_18 = arith.constant dense<0.000000e+00> : vector<8x128xf32>
    %18 = tpu.matmul %17, %7, %cst_18 {dimension_numbers = #tpu.dot_dimension_numbers<[1], [0], [0], [1], [0, 0, 1, 1], [], []>} : vector<8x32xbf16>, vector<32x128xbf16>, vector<8x128xf32> -> vector<8x128xf32>
    %19 = arith.addf %16, %18 : vector<8x128xf32>
    %20 = vector.extract_strided_slice %19 {offsets = [0, 0], sizes = [8, 96], strides = [1, 1]} : vector<8x128xf32> to vector<8x96xf32>
    %21 = arith.negf %20 : vector<8x96xf32>
    %22 = math.exp %21 : vector<8x96xf32>
    %cst_19 = arith.constant 1.000000e+00 : f32
    %23 = vector.broadcast %cst_19 : f32 to vector<8x96xf32>
    %24 = arith.addf %23, %22 : vector<8x96xf32>
    %25 = arith.divf %23, %24 : vector<8x96xf32>
    %26 = vector.extract_strided_slice %25 {offsets = [0, 0], sizes = [8, 32], strides = [1, 1]} : vector<8x96xf32> to vector<8x32xf32>
    %27 = vector.extract_strided_slice %25 {offsets = [0, 32], sizes = [8, 32], strides = [1, 1]} : vector<8x96xf32> to vector<8x32xf32>
    %28 = vector.extract_strided_slice %25 {offsets = [0, 64], sizes = [8, 32], strides = [1, 1]} : vector<8x96xf32> to vector<8x32xf32>
    %29 = vector.extract_strided_slice %19 {offsets = [0, 96], sizes = [8, 32], strides = [1, 1]} : vector<8x128xf32> to vector<8x32xf32>
    %30 = math.tanh %29 : vector<8x32xf32>
    %31 = arith.mulf %27, %15 : vector<8x32xf32>
    %32 = arith.mulf %26, %30 : vector<8x32xf32>
    %33 = arith.addf %31, %32 : vector<8x32xf32>
    %34 = math.tanh %33 : vector<8x32xf32>
    %35 = arith.mulf %28, %34 : vector<8x32xf32>
    %36 = arith.truncf %35 : vector<8x32xf32> to vector<8x32xbf16>
    %c0_20 = arith.constant 0 : index
    %c0_21 = arith.constant 0 : index
    %37 = vector.load %arg12[%c0_20, %c0_21] : memref<64x32xbf16, #tpu.memory_space<vmem>>, vector<8x32xbf16>
    tpu.vector_store %arg12[%c0_20, %c0_21], %36 {strides = array<i32>} : memref<64x32xbf16, #tpu.memory_space<vmem>>, vector<8x32xbf16>,
    %c8 = arith.constant 8 : index
    %c0_22 = arith.constant 0 : index
    %38 = vector.load %arg11[%c8, %c0_22] : memref<64x128xf32, #tpu.memory_space<vmem>>, vector<8x128xf32>
    %39 = arith.truncf %35 : vector<8x32xf32> to vector<8x32xbf16>
    %cst_23 = arith.constant dense<0.000000e+00> : vector<8x128xf32>
    %40 = tpu.matmul %39, %7, %cst_23 {dimension_numbers = #tpu.dot_dimension_numbers<[1], [0], [0], [1], [0, 0, 1, 1], [], []>} : vector<8x32xbf16>, vector<32x128xbf16>, vector<8x128xf32> -> vector<8x128xf32>
    %41 = arith.addf %38, %40 : vector<8x128xf32>
    %42 = vector.extract_strided_slice %41 {offsets = [0, 0], sizes = [8, 96], strides = [1, 1]} : vector<8x128xf32> to vector<8x96xf32>
    %43 = arith.negf %42 : vector<8x96xf32>
    %44 = math.exp %43 : vector<8x96xf32>
    %cst_24 = arith.constant 1.000000e+00 : f32
    %45 = vector.broadcast %cst_24 : f32 to vector<8x96xf32>
    %46 = arith.addf %45, %44 : vector<8x96xf32>
    %47 = arith.divf %45, %46 : vector<8x96xf32>
    %48 = vector.extract_strided_slice %47 {offsets = [0, 0], sizes = [8, 32], strides = [1, 1]} : vector<8x96xf32> to vector<8x32xf32>
    %49 = vector.extract_strided_slice %47 {offsets = [0, 32], sizes = [8, 32], strides = [1, 1]} : vector<8x96xf32> to vector<8x32xf32>
    %50 = vector.extract_strided_slice %47 {offsets = [0, 64], sizes = [8, 32], strides = [1, 1]} : vector<8x96xf32> to vector<8x32xf32>
    %51 = vector.extract_strided_slice %41 {offsets = [0, 96], sizes = [8, 32], strides = [1, 1]} : vector<8x128xf32> to vector<8x32xf32>
    %52 = math.tanh %51 : vector<8x32xf32>
    %53 = arith.mulf %49, %33 : vector<8x32xf32>
    %54 = arith.mulf %48, %52 : vector<8x32xf32>
    %55 = arith.addf %53, %54 : vector<8x32xf32>
    %56 = math.tanh %55 : vector<8x32xf32>
    %57 = arith.mulf %50, %56 : vector<8x32xf32>
    %58 = arith.truncf %57 : vector<8x32xf32> to vector<8x32xbf16>
    %c8_25 = arith.constant 8 : index
    %c0_26 = arith.constant 0 : index
    %59 = vector.load %arg12[%c8_25, %c0_26] : memref<64x32xbf16, #tpu.memory_space<vmem>>, vector<8x32xbf16>
    tpu.vector_store %arg12[%c8_25, %c0_26], %58 {strides = array<i32>} : memref<64x32xbf16, #tpu.memory_space<vmem>>, vector<8x32xbf16>,
    %c16 = arith.constant 16 : index
    %c0_27 = arith.constant 0 : index
    %60 = vector.load %arg11[%c16, %c0_27] : memref<64x128xf32, #tpu.memory_space<vmem>>, vector<8x128xf32>
    %61 = arith.truncf %57 : vector<8x32xf32> to vector<8x32xbf16>
    %cst_28 = arith.constant dense<0.000000e+00> : vector<8x128xf32>
    %62 = tpu.matmul %61, %7, %cst_28 {dimension_numbers = #tpu.dot_dimension_numbers<[1], [0], [0], [1], [0, 0, 1, 1], [], []>} : vector<8x32xbf16>, vector<32x128xbf16>, vector<8x128xf32> -> vector<8x128xf32>
    %63 = arith.addf %60, %62 : vector<8x128xf32>
    %64 = vector.extract_strided_slice %63 {offsets = [0, 0], sizes = [8, 96], strides = [1, 1]} : vector<8x128xf32> to vector<8x96xf32>
    %65 = arith.negf %64 : vector<8x96xf32>
    %66 = math.exp %65 : vector<8x96xf32>
    %cst_29 = arith.constant 1.000000e+00 : f32
    %67 = vector.broadcast %cst_29 : f32 to vector<8x96xf32>
    %68 = arith.addf %67, %66 : vector<8x96xf32>
    %69 = arith.divf %67, %68 : vector<8x96xf32>
    %70 = vector.extract_strided_slice %69 {offsets = [0, 0], sizes = [8, 32], strides = [1, 1]} : vector<8x96xf32> to vector<8x32xf32>
    %71 = vector.extract_strided_slice %69 {offsets = [0, 32], sizes = [8, 32], strides = [1, 1]} : vector<8x96xf32> to vector<8x32xf32>
    %72 = vector.extract_strided_slice %69 {offsets = [0, 64], sizes = [8, 32], strides = [1, 1]} : vector<8x96xf32> to vector<8x32xf32>
    %73 = vector.extract_strided_slice %63 {offsets = [0, 96], sizes = [8, 32], strides = [1, 1]} : vector<8x128xf32> to vector<8x32xf32>
    %74 = math.tanh %73 : vector<8x32xf32>
    %75 = arith.mulf %71, %55 : vector<8x32xf32>
    %76 = arith.mulf %70, %74 : vector<8x32xf32>
    %77 = arith.addf %75, %76 : vector<8x32xf32>
    %78 = math.tanh %77 : vector<8x32xf32>
    %79 = arith.mulf %72, %78 : vector<8x32xf32>
    %80 = arith.truncf %79 : vector<8x32xf32> to vector<8x32xbf16>
    %c16_30 = arith.constant 16 : index
    %c0_31 = arith.constant 0 : index
    %81 = vector.load %arg12[%c16_30, %c0_31] : memref<64x32xbf16, #tpu.memory_space<vmem>>, vector<8x32xbf16>
    tpu.vector_store %arg12[%c16_30, %c0_31], %80 {strides = array<i32>} : memref<64x32xbf16, #tpu.memory_space<vmem>>, vector<8x32xbf16>,
    %c24 = arith.constant 24 : index
    %c0_32 = arith.constant 0 : index
    %82 = vector.load %arg11[%c24, %c0_32] : memref<64x128xf32, #tpu.memory_space<vmem>>, vector<8x128xf32>
    %83 = arith.truncf %79 : vector<8x32xf32> to vector<8x32xbf16>
    %cst_33 = arith.constant dense<0.000000e+00> : vector<8x128xf32>
    %84 = tpu.matmul %83, %7, %cst_33 {dimension_numbers = #tpu.dot_dimension_numbers<[1], [0], [0], [1], [0, 0, 1, 1], [], []>} : vector<8x32xbf16>, vector<32x128xbf16>, vector<8x128xf32> -> vector<8x128xf32>
    %85 = arith.addf %82, %84 : vector<8x128xf32>
    %86 = vector.extract_strided_slice %85 {offsets = [0, 0], sizes = [8, 96], strides = [1, 1]} : vector<8x128xf32> to vector<8x96xf32>
    %87 = arith.negf %86 : vector<8x96xf32>
    %88 = math.exp %87 : vector<8x96xf32>
    %cst_34 = arith.constant 1.000000e+00 : f32
    %89 = vector.broadcast %cst_34 : f32 to vector<8x96xf32>
    %90 = arith.addf %89, %88 : vector<8x96xf32>
    %91 = arith.divf %89, %90 : vector<8x96xf32>
    %92 = vector.extract_strided_slice %91 {offsets = [0, 0], sizes = [8, 32], strides = [1, 1]} : vector<8x96xf32> to vector<8x32xf32>
    %93 = vector.extract_strided_slice %91 {offsets = [0, 32], sizes = [8, 32], strides = [1, 1]} : vector<8x96xf32> to vector<8x32xf32>
    %94 = vector.extract_strided_slice %91 {offsets = [0, 64], sizes = [8, 32], strides = [1, 1]} : vector<8x96xf32> to vector<8x32xf32>
    %95 = vector.extract_strided_slice %85 {offsets = [0, 96], sizes = [8, 32], strides = [1, 1]} : vector<8x128xf32> to vector<8x32xf32>
    %96 = math.tanh %95 : vector<8x32xf32>
    %97 = arith.mulf %93, %77 : vector<8x32xf32>
    %98 = arith.mulf %92, %96 : vector<8x32xf32>
    %99 = arith.addf %97, %98 : vector<8x32xf32>
    %100 = math.tanh %99 : vector<8x32xf32>
    %101 = arith.mulf %94, %100 : vector<8x32xf32>
    %102 = arith.truncf %101 : vector<8x32xf32> to vector<8x32xbf16>
    %c24_35 = arith.constant 24 : index
    %c0_36 = arith.constant 0 : index
    %103 = vector.load %arg12[%c24_35, %c0_36] : memref<64x32xbf16, #tpu.memory_space<vmem>>, vector<8x32xbf16>
    tpu.vector_store %arg12[%c24_35, %c0_36], %102 {strides = array<i32>} : memref<64x32xbf16, #tpu.memory_space<vmem>>, vector<8x32xbf16>,
    %c32 = arith.constant 32 : index
    %c0_37 = arith.constant 0 : index
    %104 = vector.load %arg11[%c32, %c0_37] : memref<64x128xf32, #tpu.memory_space<vmem>>, vector<8x128xf32>
    %105 = arith.truncf %101 : vector<8x32xf32> to vector<8x32xbf16>
    %cst_38 = arith.constant dense<0.000000e+00> : vector<8x128xf32>
    %106 = tpu.matmul %105, %7, %cst_38 {dimension_numbers = #tpu.dot_dimension_numbers<[1], [0], [0], [1], [0, 0, 1, 1], [], []>} : vector<8x32xbf16>, vector<32x128xbf16>, vector<8x128xf32> -> vector<8x128xf32>
    %107 = arith.addf %104, %106 : vector<8x128xf32>
    %108 = vector.extract_strided_slice %107 {offsets = [0, 0], sizes = [8, 96], strides = [1, 1]} : vector<8x128xf32> to vector<8x96xf32>
    %109 = arith.negf %108 : vector<8x96xf32>
    %110 = math.exp %109 : vector<8x96xf32>
    %cst_39 = arith.constant 1.000000e+00 : f32
    %111 = vector.broadcast %cst_39 : f32 to vector<8x96xf32>
    %112 = arith.addf %111, %110 : vector<8x96xf32>
    %113 = arith.divf %111, %112 : vector<8x96xf32>
    %114 = vector.extract_strided_slice %113 {offsets = [0, 0], sizes = [8, 32], strides = [1, 1]} : vector<8x96xf32> to vector<8x32xf32>
    %115 = vector.extract_strided_slice %113 {offsets = [0, 32], sizes = [8, 32], strides = [1, 1]} : vector<8x96xf32> to vector<8x32xf32>
    %116 = vector.extract_strided_slice %113 {offsets = [0, 64], sizes = [8, 32], strides = [1, 1]} : vector<8x96xf32> to vector<8x32xf32>
    %117 = vector.extract_strided_slice %107 {offsets = [0, 96], sizes = [8, 32], strides = [1, 1]} : vector<8x128xf32> to vector<8x32xf32>
    %118 = math.tanh %117 : vector<8x32xf32>
    %119 = arith.mulf %115, %99 : vector<8x32xf32>
    %120 = arith.mulf %114, %118 : vector<8x32xf32>
    %121 = arith.addf %119, %120 : vector<8x32xf32>
    %122 = math.tanh %121 : vector<8x32xf32>
    %123 = arith.mulf %116, %122 : vector<8x32xf32>
    %124 = arith.truncf %123 : vector<8x32xf32> to vector<8x32xbf16>
    %c32_40 = arith.constant 32 : index
    %c0_41 = arith.constant 0 : index
    %125 = vector.load %arg12[%c32_40, %c0_41] : memref<64x32xbf16, #tpu.memory_space<vmem>>, vector<8x32xbf16>
    tpu.vector_store %arg12[%c32_40, %c0_41], %124 {strides = array<i32>} : memref<64x32xbf16, #tpu.memory_space<vmem>>, vector<8x32xbf16>,
    %c40 = arith.constant 40 : index
    %c0_42 = arith.constant 0 : index
    %126 = vector.load %arg11[%c40, %c0_42] : memref<64x128xf32, #tpu.memory_space<vmem>>, vector<8x128xf32>
    %127 = arith.truncf %123 : vector<8x32xf32> to vector<8x32xbf16>
    %cst_43 = arith.constant dense<0.000000e+00> : vector<8x128xf32>
    %128 = tpu.matmul %127, %7, %cst_43 {dimension_numbers = #tpu.dot_dimension_numbers<[1], [0], [0], [1], [0, 0, 1, 1], [], []>} : vector<8x32xbf16>, vector<32x128xbf16>, vector<8x128xf32> -> vector<8x128xf32>
    %129 = arith.addf %126, %128 : vector<8x128xf32>
    %130 = vector.extract_strided_slice %129 {offsets = [0, 0], sizes = [8, 96], strides = [1, 1]} : vector<8x128xf32> to vector<8x96xf32>
    %131 = arith.negf %130 : vector<8x96xf32>
    %132 = math.exp %131 : vector<8x96xf32>
    %cst_44 = arith.constant 1.000000e+00 : f32
    %133 = vector.broadcast %cst_44 : f32 to vector<8x96xf32>
    %134 = arith.addf %133, %132 : vector<8x96xf32>
    %135 = arith.divf %133, %134 : vector<8x96xf32>
    %136 = vector.extract_strided_slice %135 {offsets = [0, 0], sizes = [8, 32], strides = [1, 1]} : vector<8x96xf32> to vector<8x32xf32>
    %137 = vector.extract_strided_slice %135 {offsets = [0, 32], sizes = [8, 32], strides = [1, 1]} : vector<8x96xf32> to vector<8x32xf32>
    %138 = vector.extract_strided_slice %135 {offsets = [0, 64], sizes = [8, 32], strides = [1, 1]} : vector<8x96xf32> to vector<8x32xf32>
    %139 = vector.extract_strided_slice %129 {offsets = [0, 96], sizes = [8, 32], strides = [1, 1]} : vector<8x128xf32> to vector<8x32xf32>
    %140 = math.tanh %139 : vector<8x32xf32>
    %141 = arith.mulf %137, %121 : vector<8x32xf32>
    %142 = arith.mulf %136, %140 : vector<8x32xf32>
    %143 = arith.addf %141, %142 : vector<8x32xf32>
    %144 = math.tanh %143 : vector<8x32xf32>
    %145 = arith.mulf %138, %144 : vector<8x32xf32>
    %146 = arith.truncf %145 : vector<8x32xf32> to vector<8x32xbf16>
    %c40_45 = arith.constant 40 : index
    %c0_46 = arith.constant 0 : index
    %147 = vector.load %arg12[%c40_45, %c0_46] : memref<64x32xbf16, #tpu.memory_space<vmem>>, vector<8x32xbf16>
    tpu.vector_store %arg12[%c40_45, %c0_46], %146 {strides = array<i32>} : memref<64x32xbf16, #tpu.memory_space<vmem>>, vector<8x32xbf16>,
    %c48 = arith.constant 48 : index
    %c0_47 = arith.constant 0 : index
    %148 = vector.load %arg11[%c48, %c0_47] : memref<64x128xf32, #tpu.memory_space<vmem>>, vector<8x128xf32>
    %149 = arith.truncf %145 : vector<8x32xf32> to vector<8x32xbf16>
    %cst_48 = arith.constant dense<0.000000e+00> : vector<8x128xf32>
    %150 = tpu.matmul %149, %7, %cst_48 {dimension_numbers = #tpu.dot_dimension_numbers<[1], [0], [0], [1], [0, 0, 1, 1], [], []>} : vector<8x32xbf16>, vector<32x128xbf16>, vector<8x128xf32> -> vector<8x128xf32>
    %151 = arith.addf %148, %150 : vector<8x128xf32>
    %152 = vector.extract_strided_slice %151 {offsets = [0, 0], sizes = [8, 96], strides = [1, 1]} : vector<8x128xf32> to vector<8x96xf32>
    %153 = arith.negf %152 : vector<8x96xf32>
    %154 = math.exp %153 : vector<8x96xf32>
    %cst_49 = arith.constant 1.000000e+00 : f32
    %155 = vector.broadcast %cst_49 : f32 to vector<8x96xf32>
    %156 = arith.addf %155, %154 : vector<8x96xf32>
    %157 = arith.divf %155, %156 : vector<8x96xf32>
    %158 = vector.extract_strided_slice %157 {offsets = [0, 0], sizes = [8, 32], strides = [1, 1]} : vector<8x96xf32> to vector<8x32xf32>
    %159 = vector.extract_strided_slice %157 {offsets = [0, 32], sizes = [8, 32], strides = [1, 1]} : vector<8x96xf32> to vector<8x32xf32>
    %160 = vector.extract_strided_slice %157 {offsets = [0, 64], sizes = [8, 32], strides = [1, 1]} : vector<8x96xf32> to vector<8x32xf32>
    %161 = vector.extract_strided_slice %151 {offsets = [0, 96], sizes = [8, 32], strides = [1, 1]} : vector<8x128xf32> to vector<8x32xf32>
    %162 = math.tanh %161 : vector<8x32xf32>
    %163 = arith.mulf %159, %143 : vector<8x32xf32>
    %164 = arith.mulf %158, %162 : vector<8x32xf32>
    %165 = arith.addf %163, %164 : vector<8x32xf32>
    %166 = math.tanh %165 : vector<8x32xf32>
    %167 = arith.mulf %160, %166 : vector<8x32xf32>
    %168 = arith.truncf %167 : vector<8x32xf32> to vector<8x32xbf16>
    %c48_50 = arith.constant 48 : index
    %c0_51 = arith.constant 0 : index
    %169 = vector.load %arg12[%c48_50, %c0_51] : memref<64x32xbf16, #tpu.memory_space<vmem>>, vector<8x32xbf16>
    tpu.vector_store %arg12[%c48_50, %c0_51], %168 {strides = array<i32>} : memref<64x32xbf16, #tpu.memory_space<vmem>>, vector<8x32xbf16>,
    %c56 = arith.constant 56 : index
    %c0_52 = arith.constant 0 : index
    %170 = vector.load %arg11[%c56, %c0_52] : memref<64x128xf32, #tpu.memory_space<vmem>>, vector<8x128xf32>
    %171 = arith.truncf %167 : vector<8x32xf32> to vector<8x32xbf16>
    %cst_53 = arith.constant dense<0.000000e+00> : vector<8x128xf32>
    %172 = tpu.matmul %171, %7, %cst_53 {dimension_numbers = #tpu.dot_dimension_numbers<[1], [0], [0], [1], [0, 0, 1, 1], [], []>} : vector<8x32xbf16>, vector<32x128xbf16>, vector<8x128xf32> -> vector<8x128xf32>
    %173 = arith.addf %170, %172 : vector<8x128xf32>
    %174 = vector.extract_strided_slice %173 {offsets = [0, 0], sizes = [8, 96], strides = [1, 1]} : vector<8x128xf32> to vector<8x96xf32>
    %175 = arith.negf %174 : vector<8x96xf32>
    %176 = math.exp %175 : vector<8x96xf32>
    %cst_54 = arith.constant 1.000000e+00 : f32
    %177 = vector.broadcast %cst_54 : f32 to vector<8x96xf32>
    %178 = arith.addf %177, %176 : vector<8x96xf32>
    %179 = arith.divf %177, %178 : vector<8x96xf32>
    %180 = vector.extract_strided_slice %179 {offsets = [0, 0], sizes = [8, 32], strides = [1, 1]} : vector<8x96xf32> to vector<8x32xf32>
    %181 = vector.extract_strided_slice %179 {offsets = [0, 32], sizes = [8, 32], strides = [1, 1]} : vector<8x96xf32> to vector<8x32xf32>
    %182 = vector.extract_strided_slice %179 {offsets = [0, 64], sizes = [8, 32], strides = [1, 1]} : vector<8x96xf32> to vector<8x32xf32>
    %183 = vector.extract_strided_slice %173 {offsets = [0, 96], sizes = [8, 32], strides = [1, 1]} : vector<8x128xf32> to vector<8x32xf32>
    %184 = math.tanh %183 : vector<8x32xf32>
    %185 = arith.mulf %181, %165 : vector<8x32xf32>
    %186 = arith.mulf %180, %184 : vector<8x32xf32>
    %187 = arith.addf %185, %186 : vector<8x32xf32>
    %188 = math.tanh %187 : vector<8x32xf32>
    %189 = arith.mulf %182, %188 : vector<8x32xf32>
    %190 = arith.truncf %189 : vector<8x32xf32> to vector<8x32xbf16>
    %c56_55 = arith.constant 56 : index
    %c0_56 = arith.constant 0 : index
    %191 = vector.load %arg12[%c56_55, %c0_56] : memref<64x32xbf16, #tpu.memory_space<vmem>>, vector<8x32xbf16>
    tpu.vector_store %arg12[%c56_55, %c0_56], %190 {strides = array<i32>} : memref<64x32xbf16, #tpu.memory_space<vmem>>, vector<8x32xbf16>,
    %c0_57 = arith.constant 0 : index
    %c0_58 = arith.constant 0 : index
    %c0_59 = arith.constant 0 : index
    %192 = vector.load %arg9[%c0_57, %c0_58, %c0_59] : memref<2x8x32xf32, #tpu.memory_space<vmem>>, vector<1x8x32xf32>
    %193 = vector.shape_cast %192 : vector<1x8x32xf32> to vector<8x32xf32>
    %194 = vector.shape_cast %189 : vector<8x32xf32> to vector<1x8x32xf32>
    tpu.vector_store %arg9[%c0_57, %c0_58, %c0_59], %194 {strides = array<i32>} : memref<2x8x32xf32, #tpu.memory_space<vmem>>, vector<1x8x32xf32>,
    %c0_60 = arith.constant 0 : index
    %c0_61 = arith.constant 0 : index
    %c0_62 = arith.constant 0 : index
    %195 = vector.load %arg10[%c0_60, %c0_61, %c0_62] : memref<2x8x32xf32, #tpu.memory_space<vmem>>, vector<1x8x32xf32>
    %196 = vector.shape_cast %195 : vector<1x8x32xf32> to vector<8x32xf32>
    %197 = vector.shape_cast %187 : vector<8x32xf32> to vector<1x8x32xf32>
    tpu.vector_store %arg10[%c0_60, %c0_61, %c0_62], %197 {strides = array<i32>} : memref<2x8x32xf32, #tpu.memory_space<vmem>>, vector<1x8x32xf32>,
    %c0_63 = arith.constant 0 : index
    %c0_64 = arith.constant 0 : index
    %198 = vector.load %arg12[%c0_63, %c0_64] : memref<64x32xbf16, #tpu.memory_space<vmem>>, vector<64x32xbf16>
    %c0_65 = arith.constant 0 : index
    %c0_66 = arith.constant 0 : index
    %199 = vector.load %arg6[%c0_65, %c0_66] : memref<32x128xbf16, #tpu.memory_space<vmem>>, vector<32x128xbf16>
    %c0_67 = arith.constant 0 : index
    %c0_68 = arith.constant 0 : index
    %200 = vector.load %arg7[%c0_67, %c0_68] : memref<32x128xbf16, #tpu.memory_space<vmem>>, vector<32x128xbf16>
    %c0_69 = arith.constant 0 : index
    %c0_70 = arith.constant 0 : index
    %201 = vector.load %arg8[%c0_69, %c0_70] : memref<1x128xf32, #tpu.memory_space<vmem>>, vector<1x128xf32>
    %cst_71 = arith.constant dense<0.000000e+00> : vector<64x128xf32>
    %202 = tpu.matmul %198, %199, %cst_71 {dimension_numbers = #tpu.dot_dimension_numbers<[1], [0], [0], [1], [0, 0, 1, 1], [], []>} : vector<64x32xbf16>, vector<32x128xbf16>, vector<64x128xf32> -> vector<64x128xf32>
    %203 = vector.broadcast %201 : vector<1x128xf32> to vector<64x128xf32>
    %204 = arith.addf %202, %203 : vector<64x128xf32>
    %c0_72 = arith.constant 0 : index
    %c0_73 = arith.constant 0 : index
    %205 = vector.load %arg11[%c0_72, %c0_73] : memref<64x128xf32, #tpu.memory_space<vmem>>, vector<64x128xf32>
    tpu.vector_store %arg11[%c0_72, %c0_73], %204 {strides = array<i32>} : memref<64x128xf32, #tpu.memory_space<vmem>>, vector<64x128xf32>,
    %cst_74 = arith.constant 0.000000e+00 : f32
    %206 = vector.broadcast %cst_74 : f32 to vector<8x32xf32>
    %cst_75 = arith.constant 0.000000e+00 : f32
    %207 = vector.broadcast %cst_75 : f32 to vector<8x32xf32>
    %c0_76 = arith.constant 0 : index
    %c0_77 = arith.constant 0 : index
    %208 = vector.load %arg11[%c0_76, %c0_77] : memref<64x128xf32, #tpu.memory_space<vmem>>, vector<8x128xf32>
    %209 = arith.truncf %206 : vector<8x32xf32> to vector<8x32xbf16>
    %cst_78 = arith.constant dense<0.000000e+00> : vector<8x128xf32>
    %210 = tpu.matmul %209, %200, %cst_78 {dimension_numbers = #tpu.dot_dimension_numbers<[1], [0], [0], [1], [0, 0, 1, 1], [], []>} : vector<8x32xbf16>, vector<32x128xbf16>, vector<8x128xf32> -> vector<8x128xf32>
    %211 = arith.addf %208, %210 : vector<8x128xf32>
    %212 = vector.extract_strided_slice %211 {offsets = [0, 0], sizes = [8, 96], strides = [1, 1]} : vector<8x128xf32> to vector<8x96xf32>
    %213 = arith.negf %212 : vector<8x96xf32>
    %214 = math.exp %213 : vector<8x96xf32>
    %cst_79 = arith.constant 1.000000e+00 : f32
    %215 = vector.broadcast %cst_79 : f32 to vector<8x96xf32>
    %216 = arith.addf %215, %214 : vector<8x96xf32>
    %217 = arith.divf %215, %216 : vector<8x96xf32>
    %218 = vector.extract_strided_slice %217 {offsets = [0, 0], sizes = [8, 32], strides = [1, 1]} : vector<8x96xf32> to vector<8x32xf32>
    %219 = vector.extract_strided_slice %217 {offsets = [0, 32], sizes = [8, 32], strides = [1, 1]} : vector<8x96xf32> to vector<8x32xf32>
    %220 = vector.extract_strided_slice %217 {offsets = [0, 64], sizes = [8, 32], strides = [1, 1]} : vector<8x96xf32> to vector<8x32xf32>
    %221 = vector.extract_strided_slice %211 {offsets = [0, 96], sizes = [8, 32], strides = [1, 1]} : vector<8x128xf32> to vector<8x32xf32>
    %222 = math.tanh %221 : vector<8x32xf32>
    %223 = arith.mulf %219, %207 : vector<8x32xf32>
    %224 = arith.mulf %218, %222 : vector<8x32xf32>
    %225 = arith.addf %223, %224 : vector<8x32xf32>
    %226 = math.tanh %225 : vector<8x32xf32>
    %227 = arith.mulf %220, %226 : vector<8x32xf32>
    %c8_80 = arith.constant 8 : index
    %c0_81 = arith.constant 0 : index
    %228 = vector.load %arg11[%c8_80, %c0_81] : memref<64x128xf32, #tpu.memory_space<vmem>>, vector<8x128xf32>
    %229 = arith.truncf %227 : vector<8x32xf32> to vector<8x32xbf16>
    %cst_82 = arith.constant dense<0.000000e+00> : vector<8x128xf32>
    %230 = tpu.matmul %229, %200, %cst_82 {dimension_numbers = #tpu.dot_dimension_numbers<[1], [0], [0], [1], [0, 0, 1, 1], [], []>} : vector<8x32xbf16>, vector<32x128xbf16>, vector<8x128xf32> -> vector<8x128xf32>
    %231 = arith.addf %228, %230 : vector<8x128xf32>
    %232 = vector.extract_strided_slice %231 {offsets = [0, 0], sizes = [8, 96], strides = [1, 1]} : vector<8x128xf32> to vector<8x96xf32>
    %233 = arith.negf %232 : vector<8x96xf32>
    %234 = math.exp %233 : vector<8x96xf32>
    %cst_83 = arith.constant 1.000000e+00 : f32
    %235 = vector.broadcast %cst_83 : f32 to vector<8x96xf32>
    %236 = arith.addf %235, %234 : vector<8x96xf32>
    %237 = arith.divf %235, %236 : vector<8x96xf32>
    %238 = vector.extract_strided_slice %237 {offsets = [0, 0], sizes = [8, 32], strides = [1, 1]} : vector<8x96xf32> to vector<8x32xf32>
    %239 = vector.extract_strided_slice %237 {offsets = [0, 32], sizes = [8, 32], strides = [1, 1]} : vector<8x96xf32> to vector<8x32xf32>
    %240 = vector.extract_strided_slice %237 {offsets = [0, 64], sizes = [8, 32], strides = [1, 1]} : vector<8x96xf32> to vector<8x32xf32>
    %241 = vector.extract_strided_slice %231 {offsets = [0, 96], sizes = [8, 32], strides = [1, 1]} : vector<8x128xf32> to vector<8x32xf32>
    %242 = math.tanh %241 : vector<8x32xf32>
    %243 = arith.mulf %239, %225 : vector<8x32xf32>
    %244 = arith.mulf %238, %242 : vector<8x32xf32>
    %245 = arith.addf %243, %244 : vector<8x32xf32>
    %246 = math.tanh %245 : vector<8x32xf32>
    %247 = arith.mulf %240, %246 : vector<8x32xf32>
    %c16_84 = arith.constant 16 : index
    %c0_85 = arith.constant 0 : index
    %248 = vector.load %arg11[%c16_84, %c0_85] : memref<64x128xf32, #tpu.memory_space<vmem>>, vector<8x128xf32>
    %249 = arith.truncf %247 : vector<8x32xf32> to vector<8x32xbf16>
    %cst_86 = arith.constant dense<0.000000e+00> : vector<8x128xf32>
    %250 = tpu.matmul %249, %200, %cst_86 {dimension_numbers = #tpu.dot_dimension_numbers<[1], [0], [0], [1], [0, 0, 1, 1], [], []>} : vector<8x32xbf16>, vector<32x128xbf16>, vector<8x128xf32> -> vector<8x128xf32>
    %251 = arith.addf %248, %250 : vector<8x128xf32>
    %252 = vector.extract_strided_slice %251 {offsets = [0, 0], sizes = [8, 96], strides = [1, 1]} : vector<8x128xf32> to vector<8x96xf32>
    %253 = arith.negf %252 : vector<8x96xf32>
    %254 = math.exp %253 : vector<8x96xf32>
    %cst_87 = arith.constant 1.000000e+00 : f32
    %255 = vector.broadcast %cst_87 : f32 to vector<8x96xf32>
    %256 = arith.addf %255, %254 : vector<8x96xf32>
    %257 = arith.divf %255, %256 : vector<8x96xf32>
    %258 = vector.extract_strided_slice %257 {offsets = [0, 0], sizes = [8, 32], strides = [1, 1]} : vector<8x96xf32> to vector<8x32xf32>
    %259 = vector.extract_strided_slice %257 {offsets = [0, 32], sizes = [8, 32], strides = [1, 1]} : vector<8x96xf32> to vector<8x32xf32>
    %260 = vector.extract_strided_slice %257 {offsets = [0, 64], sizes = [8, 32], strides = [1, 1]} : vector<8x96xf32> to vector<8x32xf32>
    %261 = vector.extract_strided_slice %251 {offsets = [0, 96], sizes = [8, 32], strides = [1, 1]} : vector<8x128xf32> to vector<8x32xf32>
    %262 = math.tanh %261 : vector<8x32xf32>
    %263 = arith.mulf %259, %245 : vector<8x32xf32>
    %264 = arith.mulf %258, %262 : vector<8x32xf32>
    %265 = arith.addf %263, %264 : vector<8x32xf32>
    %266 = math.tanh %265 : vector<8x32xf32>
    %267 = arith.mulf %260, %266 : vector<8x32xf32>
    %c24_88 = arith.constant 24 : index
    %c0_89 = arith.constant 0 : index
    %268 = vector.load %arg11[%c24_88, %c0_89] : memref<64x128xf32, #tpu.memory_space<vmem>>, vector<8x128xf32>
    %269 = arith.truncf %267 : vector<8x32xf32> to vector<8x32xbf16>
    %cst_90 = arith.constant dense<0.000000e+00> : vector<8x128xf32>
    %270 = tpu.matmul %269, %200, %cst_90 {dimension_numbers = #tpu.dot_dimension_numbers<[1], [0], [0], [1], [0, 0, 1, 1], [], []>} : vector<8x32xbf16>, vector<32x128xbf16>, vector<8x128xf32> -> vector<8x128xf32>
    %271 = arith.addf %268, %270 : vector<8x128xf32>
    %272 = vector.extract_strided_slice %271 {offsets = [0, 0], sizes = [8, 96], strides = [1, 1]} : vector<8x128xf32> to vector<8x96xf32>
    %273 = arith.negf %272 : vector<8x96xf32>
    %274 = math.exp %273 : vector<8x96xf32>
    %cst_91 = arith.constant 1.000000e+00 : f32
    %275 = vector.broadcast %cst_91 : f32 to vector<8x96xf32>
    %276 = arith.addf %275, %274 : vector<8x96xf32>
    %277 = arith.divf %275, %276 : vector<8x96xf32>
    %278 = vector.extract_strided_slice %277 {offsets = [0, 0], sizes = [8, 32], strides = [1, 1]} : vector<8x96xf32> to vector<8x32xf32>
    %279 = vector.extract_strided_slice %277 {offsets = [0, 32], sizes = [8, 32], strides = [1, 1]} : vector<8x96xf32> to vector<8x32xf32>
    %280 = vector.extract_strided_slice %277 {offsets = [0, 64], sizes = [8, 32], strides = [1, 1]} : vector<8x96xf32> to vector<8x32xf32>
    %281 = vector.extract_strided_slice %271 {offsets = [0, 96], sizes = [8, 32], strides = [1, 1]} : vector<8x128xf32> to vector<8x32xf32>
    %282 = math.tanh %281 : vector<8x32xf32>
    %283 = arith.mulf %279, %265 : vector<8x32xf32>
    %284 = arith.mulf %278, %282 : vector<8x32xf32>
    %285 = arith.addf %283, %284 : vector<8x32xf32>
    %286 = math.tanh %285 : vector<8x32xf32>
    %287 = arith.mulf %280, %286 : vector<8x32xf32>
    %c32_92 = arith.constant 32 : index
    %c0_93 = arith.constant 0 : index
    %288 = vector.load %arg11[%c32_92, %c0_93] : memref<64x128xf32, #tpu.memory_space<vmem>>, vector<8x128xf32>
    %289 = arith.truncf %287 : vector<8x32xf32> to vector<8x32xbf16>
    %cst_94 = arith.constant dense<0.000000e+00> : vector<8x128xf32>
    %290 = tpu.matmul %289, %200, %cst_94 {dimension_numbers = #tpu.dot_dimension_numbers<[1], [0], [0], [1], [0, 0, 1, 1], [], []>} : vector<8x32xbf16>, vector<32x128xbf16>, vector<8x128xf32> -> vector<8x128xf32>
    %291 = arith.addf %288, %290 : vector<8x128xf32>
    %292 = vector.extract_strided_slice %291 {offsets = [0, 0], sizes = [8, 96], strides = [1, 1]} : vector<8x128xf32> to vector<8x96xf32>
    %293 = arith.negf %292 : vector<8x96xf32>
    %294 = math.exp %293 : vector<8x96xf32>
    %cst_95 = arith.constant 1.000000e+00 : f32
    %295 = vector.broadcast %cst_95 : f32 to vector<8x96xf32>
    %296 = arith.addf %295, %294 : vector<8x96xf32>
    %297 = arith.divf %295, %296 : vector<8x96xf32>
    %298 = vector.extract_strided_slice %297 {offsets = [0, 0], sizes = [8, 32], strides = [1, 1]} : vector<8x96xf32> to vector<8x32xf32>
    %299 = vector.extract_strided_slice %297 {offsets = [0, 32], sizes = [8, 32], strides = [1, 1]} : vector<8x96xf32> to vector<8x32xf32>
    %300 = vector.extract_strided_slice %297 {offsets = [0, 64], sizes = [8, 32], strides = [1, 1]} : vector<8x96xf32> to vector<8x32xf32>
    %301 = vector.extract_strided_slice %291 {offsets = [0, 96], sizes = [8, 32], strides = [1, 1]} : vector<8x128xf32> to vector<8x32xf32>
    %302 = math.tanh %301 : vector<8x32xf32>
    %303 = arith.mulf %299, %285 : vector<8x32xf32>
    %304 = arith.mulf %298, %302 : vector<8x32xf32>
    %305 = arith.addf %303, %304 : vector<8x32xf32>
    %306 = math.tanh %305 : vector<8x32xf32>
    %307 = arith.mulf %300, %306 : vector<8x32xf32>
    %c40_96 = arith.constant 40 : index
    %c0_97 = arith.constant 0 : index
    %308 = vector.load %arg11[%c40_96, %c0_97] : memref<64x128xf32, #tpu.memory_space<vmem>>, vector<8x128xf32>
    %309 = arith.truncf %307 : vector<8x32xf32> to vector<8x32xbf16>
    %cst_98 = arith.constant dense<0.000000e+00> : vector<8x128xf32>
    %310 = tpu.matmul %309, %200, %cst_98 {dimension_numbers = #tpu.dot_dimension_numbers<[1], [0], [0], [1], [0, 0, 1, 1], [], []>} : vector<8x32xbf16>, vector<32x128xbf16>, vector<8x128xf32> -> vector<8x128xf32>
    %311 = arith.addf %308, %310 : vector<8x128xf32>
    %312 = vector.extract_strided_slice %311 {offsets = [0, 0], sizes = [8, 96], strides = [1, 1]} : vector<8x128xf32> to vector<8x96xf32>
    %313 = arith.negf %312 : vector<8x96xf32>
    %314 = math.exp %313 : vector<8x96xf32>
    %cst_99 = arith.constant 1.000000e+00 : f32
    %315 = vector.broadcast %cst_99 : f32 to vector<8x96xf32>
    %316 = arith.addf %315, %314 : vector<8x96xf32>
    %317 = arith.divf %315, %316 : vector<8x96xf32>
    %318 = vector.extract_strided_slice %317 {offsets = [0, 0], sizes = [8, 32], strides = [1, 1]} : vector<8x96xf32> to vector<8x32xf32>
    %319 = vector.extract_strided_slice %317 {offsets = [0, 32], sizes = [8, 32], strides = [1, 1]} : vector<8x96xf32> to vector<8x32xf32>
    %320 = vector.extract_strided_slice %317 {offsets = [0, 64], sizes = [8, 32], strides = [1, 1]} : vector<8x96xf32> to vector<8x32xf32>
    %321 = vector.extract_strided_slice %311 {offsets = [0, 96], sizes = [8, 32], strides = [1, 1]} : vector<8x128xf32> to vector<8x32xf32>
    %322 = math.tanh %321 : vector<8x32xf32>
    %323 = arith.mulf %319, %305 : vector<8x32xf32>
    %324 = arith.mulf %318, %322 : vector<8x32xf32>
    %325 = arith.addf %323, %324 : vector<8x32xf32>
    %326 = math.tanh %325 : vector<8x32xf32>
    %327 = arith.mulf %320, %326 : vector<8x32xf32>
    %c48_100 = arith.constant 48 : index
    %c0_101 = arith.constant 0 : index
    %328 = vector.load %arg11[%c48_100, %c0_101] : memref<64x128xf32, #tpu.memory_space<vmem>>, vector<8x128xf32>
    %329 = arith.truncf %327 : vector<8x32xf32> to vector<8x32xbf16>
    %cst_102 = arith.constant dense<0.000000e+00> : vector<8x128xf32>
    %330 = tpu.matmul %329, %200, %cst_102 {dimension_numbers = #tpu.dot_dimension_numbers<[1], [0], [0], [1], [0, 0, 1, 1], [], []>} : vector<8x32xbf16>, vector<32x128xbf16>, vector<8x128xf32> -> vector<8x128xf32>
    %331 = arith.addf %328, %330 : vector<8x128xf32>
    %332 = vector.extract_strided_slice %331 {offsets = [0, 0], sizes = [8, 96], strides = [1, 1]} : vector<8x128xf32> to vector<8x96xf32>
    %333 = arith.negf %332 : vector<8x96xf32>
    %334 = math.exp %333 : vector<8x96xf32>
    %cst_103 = arith.constant 1.000000e+00 : f32
    %335 = vector.broadcast %cst_103 : f32 to vector<8x96xf32>
    %336 = arith.addf %335, %334 : vector<8x96xf32>
    %337 = arith.divf %335, %336 : vector<8x96xf32>
    %338 = vector.extract_strided_slice %337 {offsets = [0, 0], sizes = [8, 32], strides = [1, 1]} : vector<8x96xf32> to vector<8x32xf32>
    %339 = vector.extract_strided_slice %337 {offsets = [0, 32], sizes = [8, 32], strides = [1, 1]} : vector<8x96xf32> to vector<8x32xf32>
    %340 = vector.extract_strided_slice %337 {offsets = [0, 64], sizes = [8, 32], strides = [1, 1]} : vector<8x96xf32> to vector<8x32xf32>
    %341 = vector.extract_strided_slice %331 {offsets = [0, 96], sizes = [8, 32], strides = [1, 1]} : vector<8x128xf32> to vector<8x32xf32>
    %342 = math.tanh %341 : vector<8x32xf32>
    %343 = arith.mulf %339, %325 : vector<8x32xf32>
    %344 = arith.mulf %338, %342 : vector<8x32xf32>
    %345 = arith.addf %343, %344 : vector<8x32xf32>
    %346 = math.tanh %345 : vector<8x32xf32>
    %347 = arith.mulf %340, %346 : vector<8x32xf32>
    %c56_104 = arith.constant 56 : index
    %c0_105 = arith.constant 0 : index
    %348 = vector.load %arg11[%c56_104, %c0_105] : memref<64x128xf32, #tpu.memory_space<vmem>>, vector<8x128xf32>
    %349 = arith.truncf %347 : vector<8x32xf32> to vector<8x32xbf16>
    %cst_106 = arith.constant dense<0.000000e+00> : vector<8x128xf32>
    %350 = tpu.matmul %349, %200, %cst_106 {dimension_numbers = #tpu.dot_dimension_numbers<[1], [0], [0], [1], [0, 0, 1, 1], [], []>} : vector<8x32xbf16>, vector<32x128xbf16>, vector<8x128xf32> -> vector<8x128xf32>
    %351 = arith.addf %348, %350 : vector<8x128xf32>
    %352 = vector.extract_strided_slice %351 {offsets = [0, 0], sizes = [8, 96], strides = [1, 1]} : vector<8x128xf32> to vector<8x96xf32>
    %353 = arith.negf %352 : vector<8x96xf32>
    %354 = math.exp %353 : vector<8x96xf32>
    %cst_107 = arith.constant 1.000000e+00 : f32
    %355 = vector.broadcast %cst_107 : f32 to vector<8x96xf32>
    %356 = arith.addf %355, %354 : vector<8x96xf32>
    %357 = arith.divf %355, %356 : vector<8x96xf32>
    %358 = vector.extract_strided_slice %357 {offsets = [0, 0], sizes = [8, 32], strides = [1, 1]} : vector<8x96xf32> to vector<8x32xf32>
    %359 = vector.extract_strided_slice %357 {offsets = [0, 32], sizes = [8, 32], strides = [1, 1]} : vector<8x96xf32> to vector<8x32xf32>
    %360 = vector.extract_strided_slice %357 {offsets = [0, 64], sizes = [8, 32], strides = [1, 1]} : vector<8x96xf32> to vector<8x32xf32>
    %361 = vector.extract_strided_slice %351 {offsets = [0, 96], sizes = [8, 32], strides = [1, 1]} : vector<8x128xf32> to vector<8x32xf32>
    %362 = math.tanh %361 : vector<8x32xf32>
    %363 = arith.mulf %359, %345 : vector<8x32xf32>
    %364 = arith.mulf %358, %362 : vector<8x32xf32>
    %365 = arith.addf %363, %364 : vector<8x32xf32>
    %366 = math.tanh %365 : vector<8x32xf32>
    %367 = arith.mulf %360, %366 : vector<8x32xf32>
    %c1 = arith.constant 1 : index
    %c0_108 = arith.constant 0 : index
    %c0_109 = arith.constant 0 : index
    %368 = vector.load %arg9[%c1, %c0_108, %c0_109] : memref<2x8x32xf32, #tpu.memory_space<vmem>>, vector<1x8x32xf32>
    %369 = vector.shape_cast %368 : vector<1x8x32xf32> to vector<8x32xf32>
    %370 = vector.shape_cast %367 : vector<8x32xf32> to vector<1x8x32xf32>
    tpu.vector_store %arg9[%c1, %c0_108, %c0_109], %370 {strides = array<i32>} : memref<2x8x32xf32, #tpu.memory_space<vmem>>, vector<1x8x32xf32>,
    %c1_110 = arith.constant 1 : index
    %c0_111 = arith.constant 0 : index
    %c0_112 = arith.constant 0 : index
    %371 = vector.load %arg10[%c1_110, %c0_111, %c0_112] : memref<2x8x32xf32, #tpu.memory_space<vmem>>, vector<1x8x32xf32>
    %372 = vector.shape_cast %371 : vector<1x8x32xf32> to vector<8x32xf32>
    %373 = vector.shape_cast %365 : vector<8x32xf32> to vector<1x8x32xf32>
    tpu.vector_store %arg10[%c1_110, %c0_111, %c0_112], %373 {strides = array<i32>} : memref<2x8x32xf32, #tpu.memory_space<vmem>>, vector<1x8x32xf32>,
    return
  }
}

</mosaic_0001>

<llo_original>
// kernel: tpu_custom_call.1
$region0: #{tpu_custom_call.1}
  #allocation0 [shape = 'u32[]', space=smem, size = 0x4, offset = 0x4, fixed_abs, tag = 'smem constant byte address 0x4 - core index']
  #allocation1 [shape = 'u32[144,128]{1,0:T(1,128)}', space=vmem, size = 0x12000, scoped, tag = 'internal scratch']
  #allocation2 [shape = 'f32[64,128]{1,0:T(8,128)}', space=vmem, size = 0x8000, scoped, tag = 'scratch operand']
  #allocation3 [shape = 'bf16[64,32]{1,0:T(8,128)(2,1)}', space=vmem, size = 0x4000, scoped, tag = 'scratch operand']
  %s0 = inlined_call_operand.vmem [shape: bf16[64,16], index: 0, kind: input, shape index: {}]
  %s1 = inlined_call_operand.hbm [shape: bf16[16,32], index: 1, kind: input, shape index: {}]
  %s2 = inlined_call_operand.vmem [shape: f32[1,32], index: 2, kind: input, shape index: {}]
  %s3 = inlined_call_operand.vmem [shape: bf16[32,128], index: 3, kind: input, shape index: {}]
  %s4 = inlined_call_operand.vmem [shape: bf16[32,128], index: 4, kind: input, shape index: {}]
  %s5 = inlined_call_operand.hbm [shape: f32[1,128], index: 5, kind: input, shape index: {}]
  %s6 = inlined_call_operand.vmem [shape: bf16[32,128], index: 6, kind: input, shape index: {}]
  %s7 = inlined_call_operand.hbm [shape: bf16[32,128], index: 7, kind: input, shape index: {}]
  %s8 = inlined_call_operand.vmem [shape: f32[1,128], index: 8, kind: input, shape index: {}]
  %s9 = inlined_call_operand.hbm [shape: f32[2,8,32], index: 9, kind: output, shape index: {0}]
  %s10 = inlined_call_operand.hbm [shape: f32[2,8,32], index: 10, kind: output, shape index: {1}]
  %11 = xla_tuple %s9, %s10
  %s12 = sld [smem:[#allocation0]]
  $region66: #{tpu_custom_call.1} parent=0
    _
  %s14 = ssub.s32 1, %s12
  %s15 = scalar_select 0, %s14, %s12
  $region1: #{tpu_custom_call.1} parent=0
    #allocation4 [shape = 'u8[4096]{0}', space=vmem, size = 0x1000, scoped, tag = 'input window, operand 1, single buffered']
    #allocation5 [shape = 's32[1]{0}', space=sflag, size = 0x4, scoped, tag = 'scoped memory for tpu_custom_call.1']
    #allocation6 [shape = 's32[1]{0}', space=sflag, size = 0x4, scoped, tag = 'scoped memory for tpu_custom_call.1']
    #allocation7 [shape = 'u8[512]{0}', space=vmem, size = 0x400, scoped, tag = 'input window, operand 5, single buffered']
    #allocation8 [shape = 's32[1]{0}', space=sflag, size = 0x4, scoped, tag = 'scoped memory for tpu_custom_call.1']
    #allocation9 [shape = 'u8[8192]{0}', space=vmem, size = 0x2000, scoped, tag = 'input window, operand 7, single buffered']
    #allocation10 [shape = 'u8[8192]{0}', space=vmem, size = 0x2000, scoped, tag = 'output window, operand 0, single buffered']
    #allocation11 [shape = 'u8[8192]{0}', space=vmem, size = 0x2000, scoped, tag = 'output window, operand 1, single buffered']
    #allocation12 [shape = 's32[1]{0}', space=sflag, size = 0x4, scoped, tag = 'scoped memory for tpu_custom_call.1']
    %16 = vsyncpa [#allocation5], 0
    %17 = vsyncpa [#allocation8], 0
    %18 = vsyncpa [#allocation6], 0
    %19 = vsyncpa [#allocation12], 0
    // Predicated region
    $region2: #{tpu_custom_call.1} parent=1 // pred_check
      _
    $region3: #{tpu_custom_call.1} parent=1 // pred_check_branch
      %21 = sbr.rel (0) target = $region5
    $region4: #{tpu_custom_call.1} parent=1 // pred_region
      _
    $region5: #{tpu_custom_call.1} parent=1 // pred_fallthru
      _
    // Predicated region
    $region6: #{tpu_custom_call.1} parent=1 // pred_check
      _
    $region7: #{tpu_custom_call.1} parent=1 // pred_check_branch
      %23 = sbr.rel (0) target = $region9
    $region8: #{tpu_custom_call.1} parent=1 // pred_region
      %s25 = ssub.s32 128, 128
      %26 = vsyncadd [#allocation5], %s25
      %s27 = sshll.u32 [#allocation4], 4
      %s28 = int_to_ptr.vmem [resolvable:$true] %s27
      %33 = dma.hbm_to_vmem [thread:$0]  %s1, 128, %s28, [#allocation5], 64, 64, 4
    $region9: #{tpu_custom_call.1} parent=1 // pred_fallthru
      _
    // Predicated region
    $region10: #{tpu_custom_call.1} parent=1 // pred_check
      _
    $region11: #{tpu_custom_call.1} parent=1 // pred_check_branch
      %35 = sbr.rel (0) target = $region13
    $region12: #{tpu_custom_call.1} parent=1 // pred_region
      _
    $region13: #{tpu_custom_call.1} parent=1 // pred_fallthru
      _
    // Predicated region
    $region14: #{tpu_custom_call.1} parent=1 // pred_check
      _
    $region15: #{tpu_custom_call.1} parent=1 // pred_check_branch
      %37 = sbr.rel (0) target = $region17
    $region16: #{tpu_custom_call.1} parent=1 // pred_region
      _
    $region17: #{tpu_custom_call.1} parent=1 // pred_fallthru
      _
    // Predicated region
    $region18: #{tpu_custom_call.1} parent=1 // pred_check
      _
    $region19: #{tpu_custom_call.1} parent=1 // pred_check_branch
      %39 = sbr.rel (0) target = $region21
    $region20: #{tpu_custom_call.1} parent=1 // pred_region
      _
    $region21: #{tpu_custom_call.1} parent=1 // pred_fallthru
      _
    // Predicated region
    $region22: #{tpu_custom_call.1} parent=1 // pred_check
      _
    $region23: #{tpu_custom_call.1} parent=1 // pred_check_branch
      %41 = sbr.rel (0) target = $region25
    $region24: #{tpu_custom_call.1} parent=1 // pred_region
      %s43 = ssub.s32 16, 16
      %44 = vsyncadd [#allocation8], %s43
      %s46 = sshll.u32 [#allocation7], 4
      %s47 = int_to_ptr.vmem [resolvable:$true] %s46
      %49 = dma.hbm_to_vmem [thread:$0]  %s5, 16, %s47, [#allocation8]
    $region25: #{tpu_custom_call.1} parent=1 // pred_fallthru
      _
    // Predicated region
    $region26: #{tpu_custom_call.1} parent=1 // pred_check
      _
    $region27: #{tpu_custom_call.1} parent=1 // pred_check_branch
      %51 = sbr.rel (0) target = $region29
    $region28: #{tpu_custom_call.1} parent=1 // pred_region
      _
    $region29: #{tpu_custom_call.1} parent=1 // pred_fallthru
      _
    // Predicated region
    $region30: #{tpu_custom_call.1} parent=1 // pred_check
      _
    $region31: #{tpu_custom_call.1} parent=1 // pred_check_branch
      %53 = sbr.rel (0) target = $region33
    $region32: #{tpu_custom_call.1} parent=1 // pred_region
      %s55 = ssub.s32 256, 256
      %56 = vsyncadd [#allocation8], %s55
      %s57 = sshll.u32 [#allocation9], 4
      %s58 = int_to_ptr.vmem [resolvable:$true] %s57
      %63 = dma.hbm_to_vmem [thread:$0]  %s7, 256, %s58, [#allocation8], 64, 64, 4
    $region33: #{tpu_custom_call.1} parent=1 // pred_fallthru
      _
    // Predicated region
    $region34: #{tpu_custom_call.1} parent=1 // pred_check
      _
    $region35: #{tpu_custom_call.1} parent=1 // pred_check_branch
      %65 = sbr.rel (0) target = $region37
    $region36: #{tpu_custom_call.1} parent=1 // pred_region
      _
    $region37: #{tpu_custom_call.1} parent=1 // pred_fallthru
      _
    // Predicated region
    $region38: #{tpu_custom_call.1} parent=1 // pred_check
      _
    $region39: #{tpu_custom_call.1} parent=1 // pred_check_branch
      %67 = sbr.rel (0) target = $region41
    $region40: #{tpu_custom_call.1} parent=1 // pred_region
      %68 = dma.done [#allocation5], 128
    $region41: #{tpu_custom_call.1} parent=1 // pred_fallthru
      _
    // Predicated region
    $region42: #{tpu_custom_call.1} parent=1 // pred_check
      _
    $region43: #{tpu_custom_call.1} parent=1 // pred_check_branch
      %70 = sbr.rel (0) target = $region45
    $region44: #{tpu_custom_call.1} parent=1 // pred_region
      %71 = dma.done [#allocation8], 16
    $region45: #{tpu_custom_call.1} parent=1 // pred_fallthru
      _
    // Predicated region
    $region46: #{tpu_custom_call.1} parent=1 // pred_check
      _
    $region47: #{tpu_custom_call.1} parent=1 // pred_check_branch
      %73 = sbr.rel (0) target = $region49
    $region48: #{tpu_custom_call.1} parent=1 // pred_region
      %74 = dma.done [#allocation8], 256
    $region49: #{tpu_custom_call.1} parent=1 // pred_fallthru
      _
    %v76 = vld [vmem:[%s0] sm:$0xf]
    %v77 = vld [vmem:[%s0 + $0x4] sm:$0xf]
    %v78 = vld [vmem:[%s0 + $0x8] sm:$0xf]
    %v79 = vld [vmem:[%s0 + $0xc] sm:$0xf]
    %v80 = vld [vmem:[%s0 + $0x10] sm:$0xf]
    %v81 = vld [vmem:[%s0 + $0x14] sm:$0xf]
    %v82 = vld [vmem:[%s0 + $0x18] sm:$0xf]
    %v83 = vld [vmem:[%s0 + $0x1c] sm:$0xf]
    %v84 = vld [vmem:[#allocation4] sm:$0xf]
    %v85 = vld [vmem:[#allocation4 + $0x4] sm:$0xf]
    %v86 = vld [vmem:[%s2] sm:$0x1]
    %v88 = vlaneseq
    %v89 = vshrl.u32 %v88, 7
    %v90 = vsub.s32 0, %v89
    %v91 = vrot.slane %v86, %v90
    %v101 = vunpack.c.l.b16 %v76
    %v102 = vunpack.c.l.b16 %v77
    %v103 = vunpack.c.l.b16 %v78
    %v104 = vunpack.c.l.b16 %v79
    %v105 = vunpack.c.l.b16 %v80
    %v106 = vunpack.c.l.b16 %v81
    %v107 = vunpack.c.l.b16 %v82
    %v108 = vunpack.c.l.b16 %v83
    %v109 = vpack.c.b16 %v102, %v101
    %v110 = vpack.c.b16 %v104, %v103
    %v111 = vpack.c.b16 %v106, %v105
    %v112 = vpack.c.b16 %v108, %v107
    %v115 = vunpack.c.l.b16 %v84
    %v116 = vunpack.c.l.b16 %v85
    %v117 = vpack.c.b16 %v116, %v115
    %vm119 = vcmask 130048
    %v121 = vsel %vm119, %v109, 0
    %v124 = vsel %vm119, %v110, 0
    %v127 = vsel %vm119, %v111, 0
    %v130 = vsel %vm119, %v112, 0
    %132 = vmatprep.subr.bf16.mxu0 0
    %133 = vmatpush1.bf16.msra.mxu0 0
    %134 = vmatprep.subr.bf16.mxu0 0
    %135 = vmatpush1.bf16.msra.mxu0 0
    %136 = vmatprep.subr.bf16.mxu0 0
    %137 = vmatpush1.bf16.msra.mxu0 0
    %138 = vmatprep.subr.bf16.mxu0 0
    %139 = vmatpush1.bf16.msra.mxu0 0
    %140 = vmatprep.subr.bf16.mxu0 0
    %141 = vmatpush1.bf16.msra.mxu0 0
    %142 = vmatprep.subr.bf16.mxu0 0
    %143 = vmatpush1.bf16.msra.mxu0 0
    %144 = vmatprep.subr.bf16.mxu0 0
    %145 = vmatpush1.bf16.msra.mxu0 0
    %146 = vmatprep.subr.bf16.mxu0 0
    %147 = vmatpush1.bf16.msra.mxu0 %v117
    %148 = vmatprep.subr.bf16.mxu0 0
    %149 = vmatpush2.bf16.msra.mxu0 0
    %150 = vmatprep.subr.bf16.mxu0 0
    %151 = vmatpush2.bf16.msra.mxu0 0
    %152 = vmatprep.subr.bf16.mxu0 0
    %153 = vmatpush2.bf16.msra.mxu0 0
    %154 = vmatprep.subr.bf16.mxu0 0
    %155 = vmatpush2.bf16.msra.mxu0 0
    %156 = vmatprep.subr.bf16.mxu0 0
    %157 = vmatpush2.bf16.msra.mxu0 0
    %158 = vmatprep.subr.bf16.mxu0 0
    %159 = vmatpush2.bf16.msra.mxu0 0
    %160 = vmatprep.subr.bf16.mxu0 0
    %161 = vmatpush2.bf16.msra.mxu0 0
    %162 = vmatprep.subr.bf16.mxu0 0
    %163 = vmatpush2.bf16.msra.mxu0 0
    %164 = vmatprep.mubr.bf16.mxu0 0
    %165 = vmatmul.mubr.bf16.gmra.mxu0 %v121
    %v166 = vpop.f32.mrf.mxu0
    %v167 = vadd.f32 %v91, %v166
    %v168 = vpop.f32.mrf.mxu0
    %v169 = vpop.f32.mrf.mxu0
    %v170 = vadd.f32 %v91, %v169
    %v171 = vpop.f32.mrf.mxu0
    %172 = vmatprep.mubr.bf16.mxu0 0
    %173 = vmatmul.mubr.bf16.gmra.mxu0 %v124
    %v174 = vpop.f32.mrf.mxu0
    %v175 = vadd.f32 %v91, %v174
    %v176 = vpop.f32.mrf.mxu0
    %v177 = vpop.f32.mrf.mxu0
    %v178 = vadd.f32 %v91, %v177
    %v179 = vpop.f32.mrf.mxu0
    %180 = vmatprep.mubr.bf16.mxu0 0
    %181 = vmatmul.mubr.bf16.gmra.mxu0 %v127
    %v182 = vpop.f32.mrf.mxu0
    %v183 = vadd.f32 %v91, %v182
    %v184 = vpop.f32.mrf.mxu0
    %v185 = vpop.f32.mrf.mxu0
    %v186 = vadd.f32 %v91, %v185
    %v187 = vpop.f32.mrf.mxu0
    %188 = vmatprep.mubr.bf16.mxu0 0
    %189 = vmatmul.mubr.bf16.gmra.mxu0 %v130
    %v190 = vpop.f32.mrf.mxu0
    %v191 = vadd.f32 %v91, %v190
    %v192 = vpop.f32.mrf.mxu0
    %v193 = vpop.f32.mrf.mxu0
    %v194 = vadd.f32 %v91, %v193
    %v195 = vpop.f32.mrf.mxu0
    %196 = vdwg.mxu0
    %v197 = vld [vmem:[%s3] sm:$0xf]
    %v198 = vld [vmem:[%s3 + $0x4] sm:$0xf]
    %v199 = vld [vmem:[%s3 + $0x8] sm:$0xf]
    %v200 = vld [vmem:[%s3 + $0xc] sm:$0xf]
    %v201 = vld [vmem:[%s4] sm:$0xf]
    %v202 = vld [vmem:[%s4 + $0x4] sm:$0xf]
    %v203 = vld [vmem:[%s4 + $0x8] sm:$0xf]
    %v204 = vld [vmem:[%s4 + $0xc] sm:$0xf]
    %v205 = vld [vmem:[#allocation7] sm:$0x1]
    %v206 = vpack.c.bf16 %v170, %v167
    %v207 = vpack.c.bf16 %v178, %v175
    %v208 = vpack.c.bf16 %v186, %v183
    %v209 = vpack.c.bf16 %v194, %v191
    %v211 = vlaneseq
    %v212 = vshrl.u32 %v211, 7
    %v213 = vsub.s32 0, %v212
    %v214 = vrot.slane %v205, %v213
    %v220 = vunpack.c.l.b16 %v197
    %v221 = vunpack.c.l.b16 %v198
    %v222 = vunpack.c.l.b16 %v199
    %v223 = vunpack.c.l.b16 %v200
    %v224 = vpack.c.b16 %v221, %v220
    %v225 = vpack.c.b16 %v223, %v222
    %vm228 = vcmask 261120
    %v230 = vsel %vm228, %v206, 0
    %v233 = vsel %vm228, %v207, 0
    %v236 = vsel %vm228, %v208, 0
    %v239 = vsel %vm228, %v209, 0
    %241 = vmatprep.subr.bf16.mxu0 0
    %242 = vmatpush1.bf16.msra.mxu0 0
    %243 = vmatprep.subr.bf16.mxu0 0
    %244 = vmatpush1.bf16.msra.mxu0 0
    %245 = vmatprep.subr.bf16.mxu0 0
    %246 = vmatpush1.bf16.msra.mxu0 0
    %247 = vmatprep.subr.bf16.mxu0 0
    %248 = vmatpush1.bf16.msra.mxu0 0
    %249 = vmatprep.subr.bf16.mxu0 0
    %250 = vmatpush1.bf16.msra.mxu0 0
    %251 = vmatprep.subr.bf16.mxu0 0
    %252 = vmatpush1.bf16.msra.mxu0 0
    %253 = vmatprep.subr.bf16.mxu0 0
    %254 = vmatpush1.bf16.msra.mxu0 %v225
    %255 = vmatprep.subr.bf16.mxu0 0
    %256 = vmatpush1.bf16.msra.mxu0 %v224
    %257 = vmatprep.subr.bf16.mxu0 0
    %258 = vmatpush2.bf16.msra.mxu0 0
    %259 = vmatprep.subr.bf16.mxu0 0
    %260 = vmatpush2.bf16.msra.mxu0 0
    %261 = vmatprep.subr.bf16.mxu0 0
    %262 = vmatpush2.bf16.msra.mxu0 0
    %263 = vmatprep.subr.bf16.mxu0 0
    %264 = vmatpush2.bf16.msra.mxu0 0
    %265 = vmatprep.subr.bf16.mxu0 0
    %266 = vmatpush2.bf16.msra.mxu0 0
    %267 = vmatprep.subr.bf16.mxu0 0
    %268 = vmatpush2.bf16.msra.mxu0 0
    %269 = vmatprep.subr.bf16.mxu0 0
    %270 = vmatpush2.bf16.msra.mxu0 0
    %271 = vmatprep.subr.bf16.mxu0 0
    %272 = vmatpush2.bf16.msra.mxu0 0
    %273 = vmatprep.mubr.bf16.mxu0 0
    %274 = vmatmul.mubr.bf16.gmra.mxu0 %v230
    %v275 = vpop.f32.mrf.mxu0
    %v276 = vadd.f32 %v214, %v275
    %v277 = vpop.f32.mrf.mxu0
    %v278 = vpop.f32.mrf.mxu0
    %v279 = vadd.f32 %v214, %v278
    %v280 = vpop.f32.mrf.mxu0
    %281 = vmatprep.mubr.bf16.mxu0 0
    %282 = vmatmul.mubr.bf16.gmra.mxu0 %v233
    %v283 = vpop.f32.mrf.mxu0
    %v284 = vadd.f32 %v214, %v283
    %v285 = vpop.f32.mrf.mxu0
    %v286 = vpop.f32.mrf.mxu0
    %v287 = vadd.f32 %v214, %v286
    %v288 = vpop.f32.mrf.mxu0
    %289 = vmatprep.mubr.bf16.mxu0 0
    %290 = vmatmul.mubr.bf16.gmra.mxu0 %v236
    %v291 = vpop.f32.mrf.mxu0
    %v292 = vadd.f32 %v214, %v291
    %v293 = vpop.f32.mrf.mxu0
    %v294 = vpop.f32.mrf.mxu0
    %v295 = vadd.f32 %v214, %v294
    %v296 = vpop.f32.mrf.mxu0
    %297 = vmatprep.mubr.bf16.mxu0 0
    %298 = vmatmul.mubr.bf16.gmra.mxu0 %v239
    %v299 = vpop.f32.mrf.mxu0
    %v300 = vadd.f32 %v214, %v299
    %v301 = vpop.f32.mrf.mxu0
    %v302 = vpop.f32.mrf.mxu0
    %v303 = vadd.f32 %v214, %v302
    %v304 = vpop.f32.mrf.mxu0
    %305 = vdwg.mxu0
    %306 = vst [vmem:[#allocation2] sm:$0xff] %v276
    %307 = vst [vmem:[#allocation2 + $0x8] sm:$0xff] %v279
    %308 = vst [vmem:[#allocation2 + $0x10] sm:$0xff] %v284
    %309 = vst [vmem:[#allocation2 + $0x18] sm:$0xff] %v287
    %310 = vst [vmem:[#allocation2 + $0x20] sm:$0xff] %v292
    %311 = vst [vmem:[#allocation2 + $0x28] sm:$0xff] %v295
    %312 = vst [vmem:[#allocation2 + $0x30] sm:$0xff] %v300
    %313 = vst [vmem:[#allocation2 + $0x38] sm:$0xff] %v303
    %v314 = vld [vmem:[#allocation2] sm:$0xff]
    %v319 = vunpack.c.l.b16 %v201
    %v320 = vunpack.c.l.b16 %v202
    %v321 = vunpack.c.l.b16 %v203
    %v322 = vunpack.c.l.b16 %v204
    %v323 = vpack.c.b16 %v320, %v319
    %v324 = vpack.c.b16 %v322, %v321
    %v328 = vsel %vm228, 0, 0
    %330 = vmatprep.subr.bf16.mxu0 0
    %331 = vmatpush1.bf16.msra.mxu0 0
    %332 = vmatprep.subr.bf16.mxu0 0
    %333 = vmatpush1.bf16.msra.mxu0 0
    %334 = vmatprep.subr.bf16.mxu0 0
    %335 = vmatpush1.bf16.msra.mxu0 0
    %336 = vmatprep.subr.bf16.mxu0 0
    %337 = vmatpush1.bf16.msra.mxu0 0
    %338 = vmatprep.subr.bf16.mxu0 0
    %339 = vmatpush1.bf16.msra.mxu0 0
    %340 = vmatprep.subr.bf16.mxu0 0
    %341 = vmatpush1.bf16.msra.mxu0 0
    %342 = vmatprep.subr.bf16.mxu0 0
    %343 = vmatpush1.bf16.msra.mxu0 %v324
    %344 = vmatprep.subr.bf16.mxu0 0
    %345 = vmatpush1.bf16.msra.mxu0 %v323
    %346 = vmatprep.subr.bf16.mxu0 0
    %347 = vmatpush2.bf16.msra.mxu0 0
    %348 = vmatprep.subr.bf16.mxu0 0
    %349 = vmatpush2.bf16.msra.mxu0 0
    %350 = vmatprep.subr.bf16.mxu0 0
    %351 = vmatpush2.bf16.msra.mxu0 0
    %352 = vmatprep.subr.bf16.mxu0 0
    %353 = vmatpush2.bf16.msra.mxu0 0
    %354 = vmatprep.subr.bf16.mxu0 0
    %355 = vmatpush2.bf16.msra.mxu0 0
    %356 = vmatprep.subr.bf16.mxu0 0
    %357 = vmatpush2.bf16.msra.mxu0 0
    %358 = vmatprep.subr.bf16.mxu0 0
    %359 = vmatpush2.bf16.msra.mxu0 0
    %360 = vmatprep.subr.bf16.mxu0 0
    %361 = vmatpush2.bf16.msra.mxu0 0
    %362 = vmatprep.mubr.bf16.mxu0 0
    %363 = vmatmul.mubr.bf16.gmra.mxu0 %v328
    %v364 = vpop.f32.mrf.mxu0
    %v365 = vadd.f32 0.0, %v364
    %v366 = vpop.f32.mrf.mxu0
    %v367 = vpop.f32.mrf.mxu0
    %v368 = vpop.f32.mrf.mxu0
    %369 = vdwg.mxu0
    %v370 = vadd.f32 %v314, %v365
    %v371 = vxor.u32 %v370, 2147483648
    %v372 = vmul.f32 %v371, 1.442695
    %v373 = vpow.pop %v372
    %v374 = vadd.f32 %v373, 1.0
    %v375 = vrcp.pop %v374
    %v376 = vmul.f32 1.0, %v375
    %v377 = vtanh.pop %v370
    %v378 = vmul.f32 %v376, 0.0
    %380 = vrot.lane.b32.xlu0 %v377, 32
    %v381 = vpop.permute.xlu0 %380
    %v383 = vmul.f32 %v376, %v381
    %385 = vrot.lane.b32.xlu0 %v383, 32
    %v386 = vpop.permute.xlu0 %385
    %v388 = vadd.f32 %v378, %v386
    %v389 = vtanh.pop %v388
    %391 = vrot.lane.b32.xlu0 %v389, 32
    %v392 = vpop.permute.xlu0 %391
    %v394 = vmul.f32 %v376, %v392
    %v395 = vpack.c.bf16 %v394, %v394
    %v397 = vunpack.c.l.b16 %v395
    %v398 = vpack.c.b16 %v397, %v397
    %399 = vrot.lane.b32.xlu0 %v398, 64
    %v400 = vpop.permute.xlu0 %399
    %vm402 = vcmask 257024
    %403 = vst.msk [vmem:[#allocation3] sm:$0xf] %vm402, %v400
    %v404 = vld [vmem:[#allocation2 + $0x8] sm:$0xff]
    %405 = vrot.lane.b32.xlu0 %v395, 64
    %v406 = vpop.permute.xlu0 %405
    %v408 = vsel %vm228, %v406, 0
    %410 = vmatprep.subr.bf16.mxu0 0
    %411 = vmatpush1.bf16.msra.mxu0 0
    %412 = vmatprep.subr.bf16.mxu0 0
    %413 = vmatpush1.bf16.msra.mxu0 0
    %414 = vmatprep.subr.bf16.mxu0 0
    %415 = vmatpush1.bf16.msra.mxu0 0
    %416 = vmatprep.subr.bf16.mxu0 0
    %417 = vmatpush1.bf16.msra.mxu0 0
    %418 = vmatprep.subr.bf16.mxu0 0
    %419 = vmatpush1.bf16.msra.mxu0 0
    %420 = vmatprep.subr.bf16.mxu0 0
    %421 = vmatpush1.bf16.msra.mxu0 0
    %422 = vmatprep.subr.bf16.mxu0 0
    %423 = vmatpush1.bf16.msra.mxu0 %v324
    %424 = vmatprep.subr.bf16.mxu0 0
    %425 = vmatpush1.bf16.msra.mxu0 %v323
    %426 = vmatprep.subr.bf16.mxu0 0
    %427 = vmatpush2.bf16.msra.mxu0 0
    %428 = vmatprep.subr.bf16.mxu0 0
    %429 = vmatpush2.bf16.msra.mxu0 0
    %430 = vmatprep.subr.bf16.mxu0 0
    %431 = vmatpush2.bf16.msra.mxu0 0
    %432 = vmatprep.subr.bf16.mxu0 0
    %433 = vmatpush2.bf16.msra.mxu0 0
    %434 = vmatprep.subr.bf16.mxu0 0
    %435 = vmatpush2.bf16.msra.mxu0 0
    %436 = vmatprep.subr.bf16.mxu0 0
    %437 = vmatpush2.bf16.msra.mxu0 0
    %438 = vmatprep.subr.bf16.mxu0 0
    %439 = vmatpush2.bf16.msra.mxu0 0
    %440 = vmatprep.subr.bf16.mxu0 0
    %441 = vmatpush2.bf16.msra.mxu0 0
    %442 = vmatprep.mubr.bf16.mxu0 0
    %443 = vmatmul.mubr.bf16.gmra.mxu0 %v408
    %v444 = vpop.f32.mrf.mxu0
    %v445 = vadd.f32 0.0, %v444
    %v446 = vpop.f32.mrf.mxu0
    %v447 = vpop.f32.mrf.mxu0
    %v448 = vpop.f32.mrf.mxu0
    %449 = vdwg.mxu0
    %v450 = vadd.f32 %v404, %v445
    %v451 = vxor.u32 %v450, 2147483648
    %v452 = vmul.f32 %v451, 1.442695
    %v453 = vpow.pop %v452
    %v454 = vadd.f32 %v453, 1.0
    %v455 = vrcp.pop %v454
    %v456 = vmul.f32 1.0, %v455
    %v457 = vtanh.pop %v450
    %v458 = vmul.f32 %v456, %v388
    %460 = vrot.lane.b32.xlu0 %v457, 32
    %v461 = vpop.permute.xlu0 %460
    %v463 = vmul.f32 %v456, %v461
    %465 = vrot.lane.b32.xlu0 %v463, 32
    %v466 = vpop.permute.xlu0 %465
    %v468 = vadd.f32 %v458, %v466
    %v469 = vtanh.pop %v468
    %471 = vrot.lane.b32.xlu0 %v469, 32
    %v472 = vpop.permute.xlu0 %471
    %v474 = vmul.f32 %v456, %v472
    %v475 = vpack.c.bf16 %v474, %v474
    %v477 = vunpack.c.l.b16 %v475
    %v478 = vpack.c.b16 %v477, %v477
    %479 = vrot.lane.b32.xlu0 %v478, 64
    %v480 = vpop.permute.xlu0 %479
    %482 = vst.msk [vmem:[#allocation3 + $0x4] sm:$0xf] %vm402, %v480
    %v483 = vld [vmem:[#allocation2 + $0x10] sm:$0xff]
    %484 = vrot.lane.b32.xlu0 %v475, 64
    %v485 = vpop.permute.xlu0 %484
    %v487 = vsel %vm228, %v485, 0
    %489 = vmatprep.subr.bf16.mxu0 0
    %490 = vmatpush1.bf16.msra.mxu0 0
    %491 = vmatprep.subr.bf16.mxu0 0
    %492 = vmatpush1.bf16.msra.mxu0 0
    %493 = vmatprep.subr.bf16.mxu0 0
    %494 = vmatpush1.bf16.msra.mxu0 0
    %495 = vmatprep.subr.bf16.mxu0 0
    %496 = vmatpush1.bf16.msra.mxu0 0
    %497 = vmatprep.subr.bf16.mxu0 0
    %498 = vmatpush1.bf16.msra.mxu0 0
    %499 = vmatprep.subr.bf16.mxu0 0
    %500 = vmatpush1.bf16.msra.mxu0 0
    %501 = vmatprep.subr.bf16.mxu0 0
    %502 = vmatpush1.bf16.msra.mxu0 %v324
    %503 = vmatprep.subr.bf16.mxu0 0
    %504 = vmatpush1.bf16.msra.mxu0 %v323
    %505 = vmatprep.subr.bf16.mxu0 0
    %506 = vmatpush2.bf16.msra.mxu0 0
    %507 = vmatprep.subr.bf16.mxu0 0
    %508 = vmatpush2.bf16.msra.mxu0 0
    %509 = vmatprep.subr.bf16.mxu0 0
    %510 = vmatpush2.bf16.msra.mxu0 0
    %511 = vmatprep.subr.bf16.mxu0 0
    %512 = vmatpush2.bf16.msra.mxu0 0
    %513 = vmatprep.subr.bf16.mxu0 0
    %514 = vmatpush2.bf16.msra.mxu0 0
    %515 = vmatprep.subr.bf16.mxu0 0
    %516 = vmatpush2.bf16.msra.mxu0 0
    %517 = vmatprep.subr.bf16.mxu0 0
    %518 = vmatpush2.bf16.msra.mxu0 0
    %519 = vmatprep.subr.bf16.mxu0 0
    %520 = vmatpush2.bf16.msra.mxu0 0
    %521 = vmatprep.mubr.bf16.mxu0 0
    %522 = vmatmul.mubr.bf16.gmra.mxu0 %v487
    %v523 = vpop.f32.mrf.mxu0
    %v524 = vadd.f32 0.0, %v523
    %v525 = vpop.f32.mrf.mxu0
    %v526 = vpop.f32.mrf.mxu0
    %v527 = vpop.f32.mrf.mxu0
    %528 = vdwg.mxu0
    %v529 = vadd.f32 %v483, %v524
    %v530 = vxor.u32 %v529, 2147483648
    %v531 = vmul.f32 %v530, 1.442695
    %v532 = vpow.pop %v531
    %v533 = vadd.f32 %v532, 1.0
    %v534 = vrcp.pop %v533
    %v535 = vmul.f32 1.0, %v534
    %v536 = vtanh.pop %v529
    %v537 = vmul.f32 %v535, %v468
    %539 = vrot.lane.b32.xlu0 %v536, 32
    %v540 = vpop.permute.xlu0 %539
    %v542 = vmul.f32 %v535, %v540
    %544 = vrot.lane.b32.xlu0 %v542, 32
    %v545 = vpop.permute.xlu0 %544
    %v547 = vadd.f32 %v537, %v545
    %v548 = vtanh.pop %v547
    %550 = vrot.lane.b32.xlu0 %v548, 32
    %v551 = vpop.permute.xlu0 %550
    %v553 = vmul.f32 %v535, %v551
    %v554 = vpack.c.bf16 %v553, %v553
    %v556 = vunpack.c.l.b16 %v554
    %v557 = vpack.c.b16 %v556, %v556
    %558 = vrot.lane.b32.xlu0 %v557, 64
    %v559 = vpop.permute.xlu0 %558
    %561 = vst.msk [vmem:[#allocation3 + $0x8] sm:$0xf] %vm402, %v559
    %v562 = vld [vmem:[#allocation2 + $0x18] sm:$0xff]
    %563 = vrot.lane.b32.xlu0 %v554, 64
    %v564 = vpop.permute.xlu0 %563
    %v566 = vsel %vm228, %v564, 0
    %568 = vmatprep.subr.bf16.mxu0 0
    %569 = vmatpush1.bf16.msra.mxu0 0
    %570 = vmatprep.subr.bf16.mxu0 0
    %571 = vmatpush1.bf16.msra.mxu0 0
    %572 = vmatprep.subr.bf16.mxu0 0
    %573 = vmatpush1.bf16.msra.mxu0 0
    %574 = vmatprep.subr.bf16.mxu0 0
    %575 = vmatpush1.bf16.msra.mxu0 0
    %576 = vmatprep.subr.bf16.mxu0 0
    %577 = vmatpush1.bf16.msra.mxu0 0
    %578 = vmatprep.subr.bf16.mxu0 0
    %579 = vmatpush1.bf16.msra.mxu0 0
    %580 = vmatprep.subr.bf16.mxu0 0
    %581 = vmatpush1.bf16.msra.mxu0 %v324
    %582 = vmatprep.subr.bf16.mxu0 0
    %583 = vmatpush1.bf16.msra.mxu0 %v323
    %584 = vmatprep.subr.bf16.mxu0 0
    %585 = vmatpush2.bf16.msra.mxu0 0
    %586 = vmatprep.subr.bf16.mxu0 0
    %587 = vmatpush2.bf16.msra.mxu0 0
    %588 = vmatprep.subr.bf16.mxu0 0
    %589 = vmatpush2.bf16.msra.mxu0 0
    %590 = vmatprep.subr.bf16.mxu0 0
    %591 = vmatpush2.bf16.msra.mxu0 0
    %592 = vmatprep.subr.bf16.mxu0 0
    %593 = vmatpush2.bf16.msra.mxu0 0
    %594 = vmatprep.subr.bf16.mxu0 0
    %595 = vmatpush2.bf16.msra.mxu0 0
    %596 = vmatprep.subr.bf16.mxu0 0
    %597 = vmatpush2.bf16.msra.mxu0 0
    %598 = vmatprep.subr.bf16.mxu0 0
    %599 = vmatpush2.bf16.msra.mxu0 0
    %600 = vmatprep.mubr.bf16.mxu0 0
    %601 = vmatmul.mubr.bf16.gmra.mxu0 %v566
    %v602 = vpop.f32.mrf.mxu0
    %v603 = vadd.f32 0.0, %v602
    %v604 = vpop.f32.mrf.mxu0
    %v605 = vpop.f32.mrf.mxu0
    %v606 = vpop.f32.mrf.mxu0
    %607 = vdwg.mxu0
    %v608 = vadd.f32 %v562, %v603
    %v609 = vxor.u32 %v608, 2147483648
    %v610 = vmul.f32 %v609, 1.442695
    %v611 = vpow.pop %v610
    %v612 = vadd.f32 %v611, 1.0
    %v613 = vrcp.pop %v612
    %v614 = vmul.f32 1.0, %v613
    %v615 = vtanh.pop %v608
    %v616 = vmul.f32 %v614, %v547
    %618 = vrot.lane.b32.xlu0 %v615, 32
    %v619 = vpop.permute.xlu0 %618
    %v621 = vmul.f32 %v614, %v619
    %623 = vrot.lane.b32.xlu0 %v621, 32
    %v624 = vpop.permute.xlu0 %623
    %v626 = vadd.f32 %v616, %v624
    %v627 = vtanh.pop %v626
    %629 = vrot.lane.b32.xlu0 %v627, 32
    %v630 = vpop.permute.xlu0 %629
    %v632 = vmul.f32 %v614, %v630
    %v633 = vpack.c.bf16 %v632, %v632
    %v635 = vunpack.c.l.b16 %v633
    %v636 = vpack.c.b16 %v635, %v635
    %637 = vrot.lane.b32.xlu0 %v636, 64
    %v638 = vpop.permute.xlu0 %637
    %640 = vst.msk [vmem:[#allocation3 + $0xc] sm:$0xf] %vm402, %v638
    %v641 = vld [vmem:[#allocation2 + $0x20] sm:$0xff]
    %642 = vrot.lane.b32.xlu0 %v633, 64
    %v643 = vpop.permute.xlu0 %642
    %v645 = vsel %vm228, %v643, 0
    %647 = vmatprep.subr.bf16.mxu0 0
    %648 = vmatpush1.bf16.msra.mxu0 0
    %649 = vmatprep.subr.bf16.mxu0 0
    %650 = vmatpush1.bf16.msra.mxu0 0
    %651 = vmatprep.subr.bf16.mxu0 0
    %652 = vmatpush1.bf16.msra.mxu0 0
    %653 = vmatprep.subr.bf16.mxu0 0
    %654 = vmatpush1.bf16.msra.mxu0 0
    %655 = vmatprep.subr.bf16.mxu0 0
    %656 = vmatpush1.bf16.msra.mxu0 0
    %657 = vmatprep.subr.bf16.mxu0 0
    %658 = vmatpush1.bf16.msra.mxu0 0
    %659 = vmatprep.subr.bf16.mxu0 0
    %660 = vmatpush1.bf16.msra.mxu0 %v324
    %661 = vmatprep.subr.bf16.mxu0 0
    %662 = vmatpush1.bf16.msra.mxu0 %v323
    %663 = vmatprep.subr.bf16.mxu0 0
    %664 = vmatpush2.bf16.msra.mxu0 0
    %665 = vmatprep.subr.bf16.mxu0 0
    %666 = vmatpush2.bf16.msra.mxu0 0
    %667 = vmatprep.subr.bf16.mxu0 0
    %668 = vmatpush2.bf16.msra.mxu0 0
    %669 = vmatprep.subr.bf16.mxu0 0
    %670 = vmatpush2.bf16.msra.mxu0 0
    %671 = vmatprep.subr.bf16.mxu0 0
    %672 = vmatpush2.bf16.msra.mxu0 0
    %673 = vmatprep.subr.bf16.mxu0 0
    %674 = vmatpush2.bf16.msra.mxu0 0
    %675 = vmatprep.subr.bf16.mxu0 0
    %676 = vmatpush2.bf16.msra.mxu0 0
    %677 = vmatprep.subr.bf16.mxu0 0
    %678 = vmatpush2.bf16.msra.mxu0 0
    %679 = vmatprep.mubr.bf16.mxu0 0
    %680 = vmatmul.mubr.bf16.gmra.mxu0 %v645
    %v681 = vpop.f32.mrf.mxu0
    %v682 = vadd.f32 0.0, %v681
    %v683 = vpop.f32.mrf.mxu0
    %v684 = vpop.f32.mrf.mxu0
    %v685 = vpop.f32.mrf.mxu0
    %686 = vdwg.mxu0
    %v687 = vadd.f32 %v641, %v682
    %v688 = vxor.u32 %v687, 2147483648
    %v689 = vmul.f32 %v688, 1.442695
    %v690 = vpow.pop %v689
    %v691 = vadd.f32 %v690, 1.0
    %v692 = vrcp.pop %v691
    %v693 = vmul.f32 1.0, %v692
    %v694 = vtanh.pop %v687
    %v695 = vmul.f32 %v693, %v626
    %697 = vrot.lane.b32.xlu0 %v694, 32
    %v698 = vpop.permute.xlu0 %697
    %v700 = vmul.f32 %v693, %v698
    %702 = vrot.lane.b32.xlu0 %v700, 32
    %v703 = vpop.permute.xlu0 %702
    %v705 = vadd.f32 %v695, %v703
    %v706 = vtanh.pop %v705
    %708 = vrot.lane.b32.xlu0 %v706, 32
    %v709 = vpop.permute.xlu0 %708
    %v711 = vmul.f32 %v693, %v709
    %v712 = vpack.c.bf16 %v711, %v711
    %v714 = vunpack.c.l.b16 %v712
    %v715 = vpack.c.b16 %v714, %v714
    %716 = vrot.lane.b32.xlu0 %v715, 64
    %v717 = vpop.permute.xlu0 %716
    %719 = vst.msk [vmem:[#allocation3 + $0x10] sm:$0xf] %vm402, %v717
    %v720 = vld [vmem:[#allocation2 + $0x28] sm:$0xff]
    %721 = vrot.lane.b32.xlu0 %v712, 64
    %v722 = vpop.permute.xlu0 %721
    %v724 = vsel %vm228, %v722, 0
    %726 = vmatprep.subr.bf16.mxu0 0
    %727 = vmatpush1.bf16.msra.mxu0 0
    %728 = vmatprep.subr.bf16.mxu0 0
    %729 = vmatpush1.bf16.msra.mxu0 0
    %730 = vmatprep.subr.bf16.mxu0 0
    %731 = vmatpush1.bf16.msra.mxu0 0
    %732 = vmatprep.subr.bf16.mxu0 0
    %733 = vmatpush1.bf16.msra.mxu0 0
    %734 = vmatprep.subr.bf16.mxu0 0
    %735 = vmatpush1.bf16.msra.mxu0 0
    %736 = vmatprep.subr.bf16.mxu0 0
    %737 = vmatpush1.bf16.msra.mxu0 0
    %738 = vmatprep.subr.bf16.mxu0 0
    %739 = vmatpush1.bf16.msra.mxu0 %v324
    %740 = vmatprep.subr.bf16.mxu0 0
    %741 = vmatpush1.bf16.msra.mxu0 %v323
    %742 = vmatprep.subr.bf16.mxu0 0
    %743 = vmatpush2.bf16.msra.mxu0 0
    %744 = vmatprep.subr.bf16.mxu0 0
    %745 = vmatpush2.bf16.msra.mxu0 0
    %746 = vmatprep.subr.bf16.mxu0 0
    %747 = vmatpush2.bf16.msra.mxu0 0
    %748 = vmatprep.subr.bf16.mxu0 0
    %749 = vmatpush2.bf16.msra.mxu0 0
    %750 = vmatprep.subr.bf16.mxu0 0
    %751 = vmatpush2.bf16.msra.mxu0 0
    %752 = vmatprep.subr.bf16.mxu0 0
    %753 = vmatpush2.bf16.msra.mxu0 0
    %754 = vmatprep.subr.bf16.mxu0 0
    %755 = vmatpush2.bf16.msra.mxu0 0
    %756 = vmatprep.subr.bf16.mxu0 0
    %757 = vmatpush2.bf16.msra.mxu0 0
    %758 = vmatprep.mubr.bf16.mxu0 0
    %759 = vmatmul.mubr.bf16.gmra.mxu0 %v724
    %v760 = vpop.f32.mrf.mxu0
    %v761 = vadd.f32 0.0, %v760
    %v762 = vpop.f32.mrf.mxu0
    %v763 = vpop.f32.mrf.mxu0
    %v764 = vpop.f32.mrf.mxu0
    %765 = vdwg.mxu0
    %v766 = vadd.f32 %v720, %v761
    %v767 = vxor.u32 %v766, 2147483648
    %v768 = vmul.f32 %v767, 1.442695
    %v769 = vpow.pop %v768
    %v770 = vadd.f32 %v769, 1.0
    %v771 = vrcp.pop %v770
    %v772 = vmul.f32 1.0, %v771
    %v773 = vtanh.pop %v766
    %v774 = vmul.f32 %v772, %v705
    %776 = vrot.lane.b32.xlu0 %v773, 32
    %v777 = vpop.permute.xlu0 %776
    %v779 = vmul.f32 %v772, %v777
    %781 = vrot.lane.b32.xlu0 %v779, 32
    %v782 = vpop.permute.xlu0 %781
    %v784 = vadd.f32 %v774, %v782
    %v785 = vtanh.pop %v784
    %787 = vrot.lane.b32.xlu0 %v785, 32
    %v788 = vpop.permute.xlu0 %787
    %v790 = vmul.f32 %v772, %v788
    %v791 = vpack.c.bf16 %v790, %v790
    %v793 = vunpack.c.l.b16 %v791
    %v794 = vpack.c.b16 %v793, %v793
    %795 = vrot.lane.b32.xlu0 %v794, 64
    %v796 = vpop.permute.xlu0 %795
    %798 = vst.msk [vmem:[#allocation3 + $0x14] sm:$0xf] %vm402, %v796
    %v799 = vld [vmem:[#allocation2 + $0x30] sm:$0xff]
    %800 = vrot.lane.b32.xlu0 %v791, 64
    %v801 = vpop.permute.xlu0 %800
    %v803 = vsel %vm228, %v801, 0
    %805 = vmatprep.subr.bf16.mxu0 0
    %806 = vmatpush1.bf16.msra.mxu0 0
    %807 = vmatprep.subr.bf16.mxu0 0
    %808 = vmatpush1.bf16.msra.mxu0 0
    %809 = vmatprep.subr.bf16.mxu0 0
    %810 = vmatpush1.bf16.msra.mxu0 0
    %811 = vmatprep.subr.bf16.mxu0 0
    %812 = vmatpush1.bf16.msra.mxu0 0
    %813 = vmatprep.subr.bf16.mxu0 0
    %814 = vmatpush1.bf16.msra.mxu0 0
    %815 = vmatprep.subr.bf16.mxu0 0
    %816 = vmatpush1.bf16.msra.mxu0 0
    %817 = vmatprep.subr.bf16.mxu0 0
    %818 = vmatpush1.bf16.msra.mxu0 %v324
    %819 = vmatprep.subr.bf16.mxu0 0
    %820 = vmatpush1.bf16.msra.mxu0 %v323
    %821 = vmatprep.subr.bf16.mxu0 0
    %822 = vmatpush2.bf16.msra.mxu0 0
    %823 = vmatprep.subr.bf16.mxu0 0
    %824 = vmatpush2.bf16.msra.mxu0 0
    %825 = vmatprep.subr.bf16.mxu0 0
    %826 = vmatpush2.bf16.msra.mxu0 0
    %827 = vmatprep.subr.bf16.mxu0 0
    %828 = vmatpush2.bf16.msra.mxu0 0
    %829 = vmatprep.subr.bf16.mxu0 0
    %830 = vmatpush2.bf16.msra.mxu0 0
    %831 = vmatprep.subr.bf16.mxu0 0
    %832 = vmatpush2.bf16.msra.mxu0 0
    %833 = vmatprep.subr.bf16.mxu0 0
    %834 = vmatpush2.bf16.msra.mxu0 0
    %835 = vmatprep.subr.bf16.mxu0 0
    %836 = vmatpush2.bf16.msra.mxu0 0
    %837 = vmatprep.mubr.bf16.mxu0 0
    %838 = vmatmul.mubr.bf16.gmra.mxu0 %v803
    %v839 = vpop.f32.mrf.mxu0
    %v840 = vadd.f32 0.0, %v839
    %v841 = vpop.f32.mrf.mxu0
    %v842 = vpop.f32.mrf.mxu0
    %v843 = vpop.f32.mrf.mxu0
    %844 = vdwg.mxu0
    %v845 = vadd.f32 %v799, %v840
    %v846 = vxor.u32 %v845, 2147483648
    %v847 = vmul.f32 %v846, 1.442695
    %v848 = vpow.pop %v847
    %v849 = vadd.f32 %v848, 1.0
    %v850 = vrcp.pop %v849
    %v851 = vmul.f32 1.0, %v850
    %v852 = vtanh.pop %v845
    %v853 = vmul.f32 %v851, %v784
    %855 = vrot.lane.b32.xlu0 %v852, 32
    %v856 = vpop.permute.xlu0 %855
    %v858 = vmul.f32 %v851, %v856
    %860 = vrot.lane.b32.xlu0 %v858, 32
    %v861 = vpop.permute.xlu0 %860
    %v863 = vadd.f32 %v853, %v861
    %v864 = vtanh.pop %v863
    %866 = vrot.lane.b32.xlu0 %v864, 32
    %v867 = vpop.permute.xlu0 %866
    %v869 = vmul.f32 %v851, %v867
    %v870 = vpack.c.bf16 %v869, %v869
    %v872 = vunpack.c.l.b16 %v870
    %v873 = vpack.c.b16 %v872, %v872
    %874 = vrot.lane.b32.xlu0 %v873, 64
    %v875 = vpop.permute.xlu0 %874
    %877 = vst.msk [vmem:[#allocation3 + $0x18] sm:$0xf] %vm402, %v875
    %v878 = vld [vmem:[#allocation2 + $0x38] sm:$0xff]
    %879 = vrot.lane.b32.xlu0 %v870, 64
    %v880 = vpop.permute.xlu0 %879
    %v882 = vsel %vm228, %v880, 0
    %884 = vmatprep.subr.bf16.mxu0 0
    %885 = vmatpush1.bf16.msra.mxu0 0
    %886 = vmatprep.subr.bf16.mxu0 0
    %887 = vmatpush1.bf16.msra.mxu0 0
    %888 = vmatprep.subr.bf16.mxu0 0
    %889 = vmatpush1.bf16.msra.mxu0 0
    %890 = vmatprep.subr.bf16.mxu0 0
    %891 = vmatpush1.bf16.msra.mxu0 0
    %892 = vmatprep.subr.bf16.mxu0 0
    %893 = vmatpush1.bf16.msra.mxu0 0
    %894 = vmatprep.subr.bf16.mxu0 0
    %895 = vmatpush1.bf16.msra.mxu0 0
    %896 = vmatprep.subr.bf16.mxu0 0
    %897 = vmatpush1.bf16.msra.mxu0 %v324
    %898 = vmatprep.subr.bf16.mxu0 0
    %899 = vmatpush1.bf16.msra.mxu0 %v323
    %900 = vmatprep.subr.bf16.mxu0 0
    %901 = vmatpush2.bf16.msra.mxu0 0
    %902 = vmatprep.subr.bf16.mxu0 0
    %903 = vmatpush2.bf16.msra.mxu0 0
    %904 = vmatprep.subr.bf16.mxu0 0
    %905 = vmatpush2.bf16.msra.mxu0 0
    %906 = vmatprep.subr.bf16.mxu0 0
    %907 = vmatpush2.bf16.msra.mxu0 0
    %908 = vmatprep.subr.bf16.mxu0 0
    %909 = vmatpush2.bf16.msra.mxu0 0
    %910 = vmatprep.subr.bf16.mxu0 0
    %911 = vmatpush2.bf16.msra.mxu0 0
    %912 = vmatprep.subr.bf16.mxu0 0
    %913 = vmatpush2.bf16.msra.mxu0 0
    %914 = vmatprep.subr.bf16.mxu0 0
    %915 = vmatpush2.bf16.msra.mxu0 0
    %916 = vmatprep.mubr.bf16.mxu0 0
    %917 = vmatmul.mubr.bf16.gmra.mxu0 %v882
    %v918 = vpop.f32.mrf.mxu0
    %v919 = vadd.f32 0.0, %v918
    %v920 = vpop.f32.mrf.mxu0
    %v921 = vpop.f32.mrf.mxu0
    %v922 = vpop.f32.mrf.mxu0
    %923 = vdwg.mxu0
    %v924 = vadd.f32 %v878, %v919
    %v925 = vxor.u32 %v924, 2147483648
    %v926 = vmul.f32 %v925, 1.442695
    %v927 = vpow.pop %v926
    %v928 = vadd.f32 %v927, 1.0
    %v929 = vrcp.pop %v928
    %v930 = vmul.f32 1.0, %v929
    %v931 = vtanh.pop %v924
    %v932 = vmul.f32 %v930, %v863
    %934 = vrot.lane.b32.xlu0 %v931, 32
    %v935 = vpop.permute.xlu0 %934
    %v937 = vmul.f32 %v930, %v935
    %939 = vrot.lane.b32.xlu0 %v937, 32
    %v940 = vpop.permute.xlu0 %939
    %v942 = vadd.f32 %v932, %v940
    %v943 = vtanh.pop %v942
    %945 = vrot.lane.b32.xlu0 %v943, 32
    %v946 = vpop.permute.xlu0 %945
    %v948 = vmul.f32 %v930, %v946
    %v949 = vpack.c.bf16 %v948, %v948
    %v951 = vunpack.c.l.b16 %v949
    %v952 = vpack.c.b16 %v951, %v951
    %953 = vrot.lane.b32.xlu0 %v952, 64
    %v954 = vpop.permute.xlu0 %953
    %956 = vst.msk [vmem:[#allocation3 + $0x1c] sm:$0xf] %vm402, %v954
    %958 = vrot.lane.b32.xlu0 %v948, 64
    %v959 = vpop.permute.xlu0 %958
    %961 = vst.msk [vmem:[#allocation10] sm:$0xff] %vm228, %v959
    %963 = vrot.lane.b32.xlu0 %v942, 96
    %v964 = vpop.permute.xlu0 %963
    %966 = vst.msk [vmem:[#allocation11] sm:$0xff] %vm228, %v964
    %v967 = vld [vmem:[#allocation3] sm:$0xf]
    %v968 = vld [vmem:[#allocation3 + $0x4] sm:$0xf]
    %v969 = vld [vmem:[#allocation3 + $0x8] sm:$0xf]
    %v970 = vld [vmem:[#allocation3 + $0xc] sm:$0xf]
    %v971 = vld [vmem:[#allocation3 + $0x10] sm:$0xf]
    %v972 = vld [vmem:[#allocation3 + $0x14] sm:$0xf]
    %v973 = vld [vmem:[#allocation3 + $0x18] sm:$0xf]
    %v974 = vld [vmem:[#allocation3 + $0x1c] sm:$0xf]
    %v975 = vld [vmem:[%s6] sm:$0xf]
    %v976 = vld [vmem:[%s6 + $0x4] sm:$0xf]
    %v977 = vld [vmem:[%s6 + $0x8] sm:$0xf]
    %v978 = vld [vmem:[%s6 + $0xc] sm:$0xf]
    %v979 = vld [vmem:[#allocation9] sm:$0xf]
    %v980 = vld [vmem:[#allocation9 + $0x4] sm:$0xf]
    %v981 = vld [vmem:[#allocation9 + $0x8] sm:$0xf]
    %v982 = vld [vmem:[#allocation9 + $0xc] sm:$0xf]
    %v983 = vld [vmem:[%s8] sm:$0x1]
    %v985 = vlaneseq
    %v986 = vshrl.u32 %v985, 7
    %v987 = vsub.s32 0, %v986
    %v988 = vrot.slane %v983, %v987
    %v998 = vunpack.c.l.b16 %v967
    %v999 = vunpack.c.l.b16 %v968
    %v1000 = vunpack.c.l.b16 %v969
    %v1001 = vunpack.c.l.b16 %v970
    %v1002 = vunpack.c.l.b16 %v971
    %v1003 = vunpack.c.l.b16 %v972
    %v1004 = vunpack.c.l.b16 %v973
    %v1005 = vunpack.c.l.b16 %v974
    %v1006 = vpack.c.b16 %v999, %v998
    %v1007 = vpack.c.b16 %v1001, %v1000
    %v1008 = vpack.c.b16 %v1003, %v1002
    %v1009 = vpack.c.b16 %v1005, %v1004
    %v1014 = vunpack.c.l.b16 %v975
    %v1015 = vunpack.c.l.b16 %v976
    %v1016 = vunpack.c.l.b16 %v977
    %v1017 = vunpack.c.l.b16 %v978
    %v1018 = vpack.c.b16 %v1015, %v1014
    %v1019 = vpack.c.b16 %v1017, %v1016
    %v1023 = vsel %vm228, %v1006, 0
    %v1026 = vsel %vm228, %v1007, 0
    %v1029 = vsel %vm228, %v1008, 0
    %v1032 = vsel %vm228, %v1009, 0
    %1034 = vmatprep.subr.bf16.mxu0 0
    %1035 = vmatpush1.bf16.msra.mxu0 0
    %1036 = vmatprep.subr.bf16.mxu0 0
    %1037 = vmatpush1.bf16.msra.mxu0 0
    %1038 = vmatprep.subr.bf16.mxu0 0
    %1039 = vmatpush1.bf16.msra.mxu0 0
    %1040 = vmatprep.subr.bf16.mxu0 0
    %1041 = vmatpush1.bf16.msra.mxu0 0
    %1042 = vmatprep.subr.bf16.mxu0 0
    %1043 = vmatpush1.bf16.msra.mxu0 0
    %1044 = vmatprep.subr.bf16.mxu0 0
    %1045 = vmatpush1.bf16.msra.mxu0 0
    %1046 = vmatprep.subr.bf16.mxu0 0
    %1047 = vmatpush1.bf16.msra.mxu0 %v1019
    %1048 = vmatprep.subr.bf16.mxu0 0
    %1049 = vmatpush1.bf16.msra.mxu0 %v1018
    %1050 = vmatprep.subr.bf16.mxu0 0
    %1051 = vmatpush2.bf16.msra.mxu0 0
    %1052 = vmatprep.subr.bf16.mxu0 0
    %1053 = vmatpush2.bf16.msra.mxu0 0
    %1054 = vmatprep.subr.bf16.mxu0 0
    %1055 = vmatpush2.bf16.msra.mxu0 0
    %1056 = vmatprep.subr.bf16.mxu0 0
    %1057 = vmatpush2.bf16.msra.mxu0 0
    %1058 = vmatprep.subr.bf16.mxu0 0
    %1059 = vmatpush2.bf16.msra.mxu0 0
    %1060 = vmatprep.subr.bf16.mxu0 0
    %1061 = vmatpush2.bf16.msra.mxu0 0
    %1062 = vmatprep.subr.bf16.mxu0 0
    %1063 = vmatpush2.bf16.msra.mxu0 0
    %1064 = vmatprep.subr.bf16.mxu0 0
    %1065 = vmatpush2.bf16.msra.mxu0 0
    %1066 = vmatprep.mubr.bf16.mxu0 0
    %1067 = vmatmul.mubr.bf16.gmra.mxu0 %v1023
    %v1068 = vpop.f32.mrf.mxu0
    %v1069 = vadd.f32 %v988, %v1068
    %v1070 = vpop.f32.mrf.mxu0
    %v1071 = vpop.f32.mrf.mxu0
    %v1072 = vadd.f32 %v988, %v1071
    %v1073 = vpop.f32.mrf.mxu0
    %1074 = vmatprep.mubr.bf16.mxu0 0
    %1075 = vmatmul.mubr.bf16.gmra.mxu0 %v1026
    %v1076 = vpop.f32.mrf.mxu0
    %v1077 = vadd.f32 %v988, %v1076
    %v1078 = vpop.f32.mrf.mxu0
    %v1079 = vpop.f32.mrf.mxu0
    %v1080 = vadd.f32 %v988, %v1079
    %v1081 = vpop.f32.mrf.mxu0
    %1082 = vmatprep.mubr.bf16.mxu0 0
    %1083 = vmatmul.mubr.bf16.gmra.mxu0 %v1029
    %v1084 = vpop.f32.mrf.mxu0
    %v1085 = vadd.f32 %v988, %v1084
    %v1086 = vpop.f32.mrf.mxu0
    %v1087 = vpop.f32.mrf.mxu0
    %v1088 = vadd.f32 %v988, %v1087
    %v1089 = vpop.f32.mrf.mxu0
    %1090 = vmatprep.mubr.bf16.mxu0 0
    %1091 = vmatmul.mubr.bf16.gmra.mxu0 %v1032
    %v1092 = vpop.f32.mrf.mxu0
    %v1093 = vadd.f32 %v988, %v1092
    %v1094 = vpop.f32.mrf.mxu0
    %v1095 = vpop.f32.mrf.mxu0
    %v1096 = vadd.f32 %v988, %v1095
    %v1097 = vpop.f32.mrf.mxu0
    %1098 = vdwg.mxu0
    %1099 = vst [vmem:[#allocation2] sm:$0xff] %v1069
    %1100 = vst [vmem:[#allocation2 + $0x8] sm:$0xff] %v1072
    %1101 = vst [vmem:[#allocation2 + $0x10] sm:$0xff] %v1077
    %1102 = vst [vmem:[#allocation2 + $0x18] sm:$0xff] %v1080
    %1103 = vst [vmem:[#allocation2 + $0x20] sm:$0xff] %v1085
    %1104 = vst [vmem:[#allocation2 + $0x28] sm:$0xff] %v1088
    %1105 = vst [vmem:[#allocation2 + $0x30] sm:$0xff] %v1093
    %1106 = vst [vmem:[#allocation2 + $0x38] sm:$0xff] %v1096
    %v1107 = vld [vmem:[#allocation2] sm:$0xff]
    %v1112 = vunpack.c.l.b16 %v979
    %v1113 = vunpack.c.l.b16 %v980
    %v1114 = vunpack.c.l.b16 %v981
    %v1115 = vunpack.c.l.b16 %v982
    %v1116 = vpack.c.b16 %v1113, %v1112
    %v1117 = vpack.c.b16 %v1115, %v1114
    %1120 = vmatprep.subr.bf16.mxu0 0
    %1121 = vmatpush1.bf16.msra.mxu0 0
    %1122 = vmatprep.subr.bf16.mxu0 0
    %1123 = vmatpush1.bf16.msra.mxu0 0
    %1124 = vmatprep.subr.bf16.mxu0 0
    %1125 = vmatpush1.bf16.msra.mxu0 0
    %1126 = vmatprep.subr.bf16.mxu0 0
    %1127 = vmatpush1.bf16.msra.mxu0 0
    %1128 = vmatprep.subr.bf16.mxu0 0
    %1129 = vmatpush1.bf16.msra.mxu0 0
    %1130 = vmatprep.subr.bf16.mxu0 0
    %1131 = vmatpush1.bf16.msra.mxu0 0
    %1132 = vmatprep.subr.bf16.mxu0 0
    %1133 = vmatpush1.bf16.msra.mxu0 %v1117
    %1134 = vmatprep.subr.bf16.mxu0 0
    %1135 = vmatpush1.bf16.msra.mxu0 %v1116
    %1136 = vmatprep.subr.bf16.mxu0 0
    %1137 = vmatpush2.bf16.msra.mxu0 0
    %1138 = vmatprep.subr.bf16.mxu0 0
    %1139 = vmatpush2.bf16.msra.mxu0 0
    %1140 = vmatprep.subr.bf16.mxu0 0
    %1141 = vmatpush2.bf16.msra.mxu0 0
    %1142 = vmatprep.subr.bf16.mxu0 0
    %1143 = vmatpush2.bf16.msra.mxu0 0
    %1144 = vmatprep.subr.bf16.mxu0 0
    %1145 = vmatpush2.bf16.msra.mxu0 0
    %1146 = vmatprep.subr.bf16.mxu0 0
    %1147 = vmatpush2.bf16.msra.mxu0 0
    %1148 = vmatprep.subr.bf16.mxu0 0
    %1149 = vmatpush2.bf16.msra.mxu0 0
    %1150 = vmatprep.subr.bf16.mxu0 0
    %1151 = vmatpush2.bf16.msra.mxu0 0
    %1152 = vmatprep.mubr.bf16.mxu0 0
    %1153 = vmatmul.mubr.bf16.gmra.mxu0 %v328
    %v1154 = vpop.f32.mrf.mxu0
    %v1155 = vadd.f32 0.0, %v1154
    %v1156 = vpop.f32.mrf.mxu0
    %v1157 = vpop.f32.mrf.mxu0
    %v1158 = vpop.f32.mrf.mxu0
    %1159 = vdwg.mxu0
    %v1160 = vadd.f32 %v1107, %v1155
    %v1161 = vxor.u32 %v1160, 2147483648
    %v1162 = vmul.f32 %v1161, 1.442695
    %v1163 = vpow.pop %v1162
    %v1164 = vadd.f32 %v1163, 1.0
    %v1165 = vrcp.pop %v1164
    %v1166 = vmul.f32 1.0, %v1165
    %v1167 = vtanh.pop %v1160
    %v1168 = vmul.f32 %v1166, 0.0
    %1170 = vrot.lane.b32.xlu0 %v1167, 32
    %v1171 = vpop.permute.xlu0 %1170
    %v1173 = vmul.f32 %v1166, %v1171
    %1175 = vrot.lane.b32.xlu0 %v1173, 32
    %v1176 = vpop.permute.xlu0 %1175
    %v1178 = vadd.f32 %v1168, %v1176
    %v1179 = vtanh.pop %v1178
    %1181 = vrot.lane.b32.xlu0 %v1179, 32
    %v1182 = vpop.permute.xlu0 %1181
    %v1184 = vmul.f32 %v1166, %v1182
    %v1185 = vld [vmem:[#allocation2 + $0x8] sm:$0xff]
    %v1186 = vpack.c.bf16 %v1184, %v1184
    %1188 = vrot.lane.b32.xlu0 %v1186, 64
    %v1189 = vpop.permute.xlu0 %1188
    %v1191 = vsel %vm228, %v1189, 0
    %1193 = vmatprep.subr.bf16.mxu0 0
    %1194 = vmatpush1.bf16.msra.mxu0 0
    %1195 = vmatprep.subr.bf16.mxu0 0
    %1196 = vmatpush1.bf16.msra.mxu0 0
    %1197 = vmatprep.subr.bf16.mxu0 0
    %1198 = vmatpush1.bf16.msra.mxu0 0
    %1199 = vmatprep.subr.bf16.mxu0 0
    %1200 = vmatpush1.bf16.msra.mxu0 0
    %1201 = vmatprep.subr.bf16.mxu0 0
    %1202 = vmatpush1.bf16.msra.mxu0 0
    %1203 = vmatprep.subr.bf16.mxu0 0
    %1204 = vmatpush1.bf16.msra.mxu0 0
    %1205 = vmatprep.subr.bf16.mxu0 0
    %1206 = vmatpush1.bf16.msra.mxu0 %v1117
    %1207 = vmatprep.subr.bf16.mxu0 0
    %1208 = vmatpush1.bf16.msra.mxu0 %v1116
    %1209 = vmatprep.subr.bf16.mxu0 0
    %1210 = vmatpush2.bf16.msra.mxu0 0
    %1211 = vmatprep.subr.bf16.mxu0 0
    %1212 = vmatpush2.bf16.msra.mxu0 0
    %1213 = vmatprep.subr.bf16.mxu0 0
    %1214 = vmatpush2.bf16.msra.mxu0 0
    %1215 = vmatprep.subr.bf16.mxu0 0
    %1216 = vmatpush2.bf16.msra.mxu0 0
    %1217 = vmatprep.subr.bf16.mxu0 0
    %1218 = vmatpush2.bf16.msra.mxu0 0
    %1219 = vmatprep.subr.bf16.mxu0 0
    %1220 = vmatpush2.bf16.msra.mxu0 0
    %1221 = vmatprep.subr.bf16.mxu0 0
    %1222 = vmatpush2.bf16.msra.mxu0 0
    %1223 = vmatprep.subr.bf16.mxu0 0
    %1224 = vmatpush2.bf16.msra.mxu0 0
    %1225 = vmatprep.mubr.bf16.mxu0 0
    %1226 = vmatmul.mubr.bf16.gmra.mxu0 %v1191
    %v1227 = vpop.f32.mrf.mxu0
    %v1228 = vadd.f32 0.0, %v1227
    %v1229 = vpop.f32.mrf.mxu0
    %v1230 = vpop.f32.mrf.mxu0
    %v1231 = vpop.f32.mrf.mxu0
    %1232 = vdwg.mxu0
    %v1233 = vadd.f32 %v1185, %v1228
    %v1234 = vxor.u32 %v1233, 2147483648
    %v1235 = vmul.f32 %v1234, 1.442695
    %v1236 = vpow.pop %v1235
    %v1237 = vadd.f32 %v1236, 1.0
    %v1238 = vrcp.pop %v1237
    %v1239 = vmul.f32 1.0, %v1238
    %v1240 = vtanh.pop %v1233
    %v1241 = vmul.f32 %v1239, %v1178
    %1243 = vrot.lane.b32.xlu0 %v1240, 32
    %v1244 = vpop.permute.xlu0 %1243
    %v1246 = vmul.f32 %v1239, %v1244
    %1248 = vrot.lane.b32.xlu0 %v1246, 32
    %v1249 = vpop.permute.xlu0 %1248
    %v1251 = vadd.f32 %v1241, %v1249
    %v1252 = vtanh.pop %v1251
    %1254 = vrot.lane.b32.xlu0 %v1252, 32
    %v1255 = vpop.permute.xlu0 %1254
    %v1257 = vmul.f32 %v1239, %v1255
    %v1258 = vld [vmem:[#allocation2 + $0x10] sm:$0xff]
    %v1259 = vpack.c.bf16 %v1257, %v1257
    %1261 = vrot.lane.b32.xlu0 %v1259, 64
    %v1262 = vpop.permute.xlu0 %1261
    %v1264 = vsel %vm228, %v1262, 0
    %1266 = vmatprep.subr.bf16.mxu0 0
    %1267 = vmatpush1.bf16.msra.mxu0 0
    %1268 = vmatprep.subr.bf16.mxu0 0
    %1269 = vmatpush1.bf16.msra.mxu0 0
    %1270 = vmatprep.subr.bf16.mxu0 0
    %1271 = vmatpush1.bf16.msra.mxu0 0
    %1272 = vmatprep.subr.bf16.mxu0 0
    %1273 = vmatpush1.bf16.msra.mxu0 0
    %1274 = vmatprep.subr.bf16.mxu0 0
    %1275 = vmatpush1.bf16.msra.mxu0 0
    %1276 = vmatprep.subr.bf16.mxu0 0
    %1277 = vmatpush1.bf16.msra.mxu0 0
    %1278 = vmatprep.subr.bf16.mxu0 0
    %1279 = vmatpush1.bf16.msra.mxu0 %v1117
    %1280 = vmatprep.subr.bf16.mxu0 0
    %1281 = vmatpush1.bf16.msra.mxu0 %v1116
    %1282 = vmatprep.subr.bf16.mxu0 0
    %1283 = vmatpush2.bf16.msra.mxu0 0
    %1284 = vmatprep.subr.bf16.mxu0 0
    %1285 = vmatpush2.bf16.msra.mxu0 0
    %1286 = vmatprep.subr.bf16.mxu0 0
    %1287 = vmatpush2.bf16.msra.mxu0 0
    %1288 = vmatprep.subr.bf16.mxu0 0
    %1289 = vmatpush2.bf16.msra.mxu0 0
    %1290 = vmatprep.subr.bf16.mxu0 0
    %1291 = vmatpush2.bf16.msra.mxu0 0
    %1292 = vmatprep.subr.bf16.mxu0 0
    %1293 = vmatpush2.bf16.msra.mxu0 0
    %1294 = vmatprep.subr.bf16.mxu0 0
    %1295 = vmatpush2.bf16.msra.mxu0 0
    %1296 = vmatprep.subr.bf16.mxu0 0
    %1297 = vmatpush2.bf16.msra.mxu0 0
    %1298 = vmatprep.mubr.bf16.mxu0 0
    %1299 = vmatmul.mubr.bf16.gmra.mxu0 %v1264
    %v1300 = vpop.f32.mrf.mxu0
    %v1301 = vadd.f32 0.0, %v1300
    %v1302 = vpop.f32.mrf.mxu0
    %v1303 = vpop.f32.mrf.mxu0
    %v1304 = vpop.f32.mrf.mxu0
    %1305 = vdwg.mxu0
    %v1306 = vadd.f32 %v1258, %v1301
    %v1307 = vxor.u32 %v1306, 2147483648
    %v1308 = vmul.f32 %v1307, 1.442695
    %v1309 = vpow.pop %v1308
    %v1310 = vadd.f32 %v1309, 1.0
    %v1311 = vrcp.pop %v1310
    %v1312 = vmul.f32 1.0, %v1311
    %v1313 = vtanh.pop %v1306
    %v1314 = vmul.f32 %v1312, %v1251
    %1316 = vrot.lane.b32.xlu0 %v1313, 32
    %v1317 = vpop.permute.xlu0 %1316
    %v1319 = vmul.f32 %v1312, %v1317
    %1321 = vrot.lane.b32.xlu0 %v1319, 32
    %v1322 = vpop.permute.xlu0 %1321
    %v1324 = vadd.f32 %v1314, %v1322
    %v1325 = vtanh.pop %v1324
    %1327 = vrot.lane.b32.xlu0 %v1325, 32
    %v1328 = vpop.permute.xlu0 %1327
    %v1330 = vmul.f32 %v1312, %v1328
    %v1331 = vld [vmem:[#allocation2 + $0x18] sm:$0xff]
    %v1332 = vpack.c.bf16 %v1330, %v1330
    %1334 = vrot.lane.b32.xlu0 %v1332, 64
    %v1335 = vpop.permute.xlu0 %1334
    %v1337 = vsel %vm228, %v1335, 0
    %1339 = vmatprep.subr.bf16.mxu0 0
    %1340 = vmatpush1.bf16.msra.mxu0 0
    %1341 = vmatprep.subr.bf16.mxu0 0
    %1342 = vmatpush1.bf16.msra.mxu0 0
    %1343 = vmatprep.subr.bf16.mxu0 0
    %1344 = vmatpush1.bf16.msra.mxu0 0
    %1345 = vmatprep.subr.bf16.mxu0 0
    %1346 = vmatpush1.bf16.msra.mxu0 0
    %1347 = vmatprep.subr.bf16.mxu0 0
    %1348 = vmatpush1.bf16.msra.mxu0 0
    %1349 = vmatprep.subr.bf16.mxu0 0
    %1350 = vmatpush1.bf16.msra.mxu0 0
    %1351 = vmatprep.subr.bf16.mxu0 0
    %1352 = vmatpush1.bf16.msra.mxu0 %v1117
    %1353 = vmatprep.subr.bf16.mxu0 0
    %1354 = vmatpush1.bf16.msra.mxu0 %v1116
    %1355 = vmatprep.subr.bf16.mxu0 0
    %1356 = vmatpush2.bf16.msra.mxu0 0
    %1357 = vmatprep.subr.bf16.mxu0 0
    %1358 = vmatpush2.bf16.msra.mxu0 0
    %1359 = vmatprep.subr.bf16.mxu0 0
    %1360 = vmatpush2.bf16.msra.mxu0 0
    %1361 = vmatprep.subr.bf16.mxu0 0
    %1362 = vmatpush2.bf16.msra.mxu0 0
    %1363 = vmatprep.subr.bf16.mxu0 0
    %1364 = vmatpush2.bf16.msra.mxu0 0
    %1365 = vmatprep.subr.bf16.mxu0 0
    %1366 = vmatpush2.bf16.msra.mxu0 0
    %1367 = vmatprep.subr.bf16.mxu0 0
    %1368 = vmatpush2.bf16.msra.mxu0 0
    %1369 = vmatprep.subr.bf16.mxu0 0
    %1370 = vmatpush2.bf16.msra.mxu0 0
    %1371 = vmatprep.mubr.bf16.mxu0 0
    %1372 = vmatmul.mubr.bf16.gmra.mxu0 %v1337
    %v1373 = vpop.f32.mrf.mxu0
    %v1374 = vadd.f32 0.0, %v1373
    %v1375 = vpop.f32.mrf.mxu0
    %v1376 = vpop.f32.mrf.mxu0
    %v1377 = vpop.f32.mrf.mxu0
    %1378 = vdwg.mxu0
    %v1379 = vadd.f32 %v1331, %v1374
    %v1380 = vxor.u32 %v1379, 2147483648
    %v1381 = vmul.f32 %v1380, 1.442695
    %v1382 = vpow.pop %v1381
    %v1383 = vadd.f32 %v1382, 1.0
    %v1384 = vrcp.pop %v1383
    %v1385 = vmul.f32 1.0, %v1384
    %v1386 = vtanh.pop %v1379
    %v1387 = vmul.f32 %v1385, %v1324
    %1389 = vrot.lane.b32.xlu0 %v1386, 32
    %v1390 = vpop.permute.xlu0 %1389
    %v1392 = vmul.f32 %v1385, %v1390
    %1394 = vrot.lane.b32.xlu0 %v1392, 32
    %v1395 = vpop.permute.xlu0 %1394
    %v1397 = vadd.f32 %v1387, %v1395
    %v1398 = vtanh.pop %v1397
    %1400 = vrot.lane.b32.xlu0 %v1398, 32
    %v1401 = vpop.permute.xlu0 %1400
    %v1403 = vmul.f32 %v1385, %v1401
    %v1404 = vld [vmem:[#allocation2 + $0x20] sm:$0xff]
    %v1405 = vpack.c.bf16 %v1403, %v1403
    %1407 = vrot.lane.b32.xlu0 %v1405, 64
    %v1408 = vpop.permute.xlu0 %1407
    %v1410 = vsel %vm228, %v1408, 0
    %1412 = vmatprep.subr.bf16.mxu0 0
    %1413 = vmatpush1.bf16.msra.mxu0 0
    %1414 = vmatprep.subr.bf16.mxu0 0
    %1415 = vmatpush1.bf16.msra.mxu0 0
    %1416 = vmatprep.subr.bf16.mxu0 0
    %1417 = vmatpush1.bf16.msra.mxu0 0
    %1418 = vmatprep.subr.bf16.mxu0 0
    %1419 = vmatpush1.bf16.msra.mxu0 0
    %1420 = vmatprep.subr.bf16.mxu0 0
    %1421 = vmatpush1.bf16.msra.mxu0 0
    %1422 = vmatprep.subr.bf16.mxu0 0
    %1423 = vmatpush1.bf16.msra.mxu0 0
    %1424 = vmatprep.subr.bf16.mxu0 0
    %1425 = vmatpush1.bf16.msra.mxu0 %v1117
    %1426 = vmatprep.subr.bf16.mxu0 0
    %1427 = vmatpush1.bf16.msra.mxu0 %v1116
    %1428 = vmatprep.subr.bf16.mxu0 0
    %1429 = vmatpush2.bf16.msra.mxu0 0
    %1430 = vmatprep.subr.bf16.mxu0 0
    %1431 = vmatpush2.bf16.msra.mxu0 0
    %1432 = vmatprep.subr.bf16.mxu0 0
    %1433 = vmatpush2.bf16.msra.mxu0 0
    %1434 = vmatprep.subr.bf16.mxu0 0
    %1435 = vmatpush2.bf16.msra.mxu0 0
    %1436 = vmatprep.subr.bf16.mxu0 0
    %1437 = vmatpush2.bf16.msra.mxu0 0
    %1438 = vmatprep.subr.bf16.mxu0 0
    %1439 = vmatpush2.bf16.msra.mxu0 0
    %1440 = vmatprep.subr.bf16.mxu0 0
    %1441 = vmatpush2.bf16.msra.mxu0 0
    %1442 = vmatprep.subr.bf16.mxu0 0
    %1443 = vmatpush2.bf16.msra.mxu0 0
    %1444 = vmatprep.mubr.bf16.mxu0 0
    %1445 = vmatmul.mubr.bf16.gmra.mxu0 %v1410
    %v1446 = vpop.f32.mrf.mxu0
    %v1447 = vadd.f32 0.0, %v1446
    %v1448 = vpop.f32.mrf.mxu0
    %v1449 = vpop.f32.mrf.mxu0
    %v1450 = vpop.f32.mrf.mxu0
    %1451 = vdwg.mxu0
    %v1452 = vadd.f32 %v1404, %v1447
    %v1453 = vxor.u32 %v1452, 2147483648
    %v1454 = vmul.f32 %v1453, 1.442695
    %v1455 = vpow.pop %v1454
    %v1456 = vadd.f32 %v1455, 1.0
    %v1457 = vrcp.pop %v1456
    %v1458 = vmul.f32 1.0, %v1457
    %v1459 = vtanh.pop %v1452
    %v1460 = vmul.f32 %v1458, %v1397
    %1462 = vrot.lane.b32.xlu0 %v1459, 32
    %v1463 = vpop.permute.xlu0 %1462
    %v1465 = vmul.f32 %v1458, %v1463
    %1467 = vrot.lane.b32.xlu0 %v1465, 32
    %v1468 = vpop.permute.xlu0 %1467
    %v1470 = vadd.f32 %v1460, %v1468
    %v1471 = vtanh.pop %v1470
    %1473 = vrot.lane.b32.xlu0 %v1471, 32
    %v1474 = vpop.permute.xlu0 %1473
    %v1476 = vmul.f32 %v1458, %v1474
    %v1477 = vld [vmem:[#allocation2 + $0x28] sm:$0xff]
    %v1478 = vpack.c.bf16 %v1476, %v1476
    %1480 = vrot.lane.b32.xlu0 %v1478, 64
    %v1481 = vpop.permute.xlu0 %1480
    %v1483 = vsel %vm228, %v1481, 0
    %1485 = vmatprep.subr.bf16.mxu0 0
    %1486 = vmatpush1.bf16.msra.mxu0 0
    %1487 = vmatprep.subr.bf16.mxu0 0
    %1488 = vmatpush1.bf16.msra.mxu0 0
    %1489 = vmatprep.subr.bf16.mxu0 0
    %1490 = vmatpush1.bf16.msra.mxu0 0
    %1491 = vmatprep.subr.bf16.mxu0 0
    %1492 = vmatpush1.bf16.msra.mxu0 0
    %1493 = vmatprep.subr.bf16.mxu0 0
    %1494 = vmatpush1.bf16.msra.mxu0 0
    %1495 = vmatprep.subr.bf16.mxu0 0
    %1496 = vmatpush1.bf16.msra.mxu0 0
    %1497 = vmatprep.subr.bf16.mxu0 0
    %1498 = vmatpush1.bf16.msra.mxu0 %v1117
    %1499 = vmatprep.subr.bf16.mxu0 0
    %1500 = vmatpush1.bf16.msra.mxu0 %v1116
    %1501 = vmatprep.subr.bf16.mxu0 0
    %1502 = vmatpush2.bf16.msra.mxu0 0
    %1503 = vmatprep.subr.bf16.mxu0 0
    %1504 = vmatpush2.bf16.msra.mxu0 0
    %1505 = vmatprep.subr.bf16.mxu0 0
    %1506 = vmatpush2.bf16.msra.mxu0 0
    %1507 = vmatprep.subr.bf16.mxu0 0
    %1508 = vmatpush2.bf16.msra.mxu0 0
    %1509 = vmatprep.subr.bf16.mxu0 0
    %1510 = vmatpush2.bf16.msra.mxu0 0
    %1511 = vmatprep.subr.bf16.mxu0 0
    %1512 = vmatpush2.bf16.msra.mxu0 0
    %1513 = vmatprep.subr.bf16.mxu0 0
    %1514 = vmatpush2.bf16.msra.mxu0 0
    %1515 = vmatprep.subr.bf16.mxu0 0
    %1516 = vmatpush2.bf16.msra.mxu0 0
    %1517 = vmatprep.mubr.bf16.mxu0 0
    %1518 = vmatmul.mubr.bf16.gmra.mxu0 %v1483
    %v1519 = vpop.f32.mrf.mxu0
    %v1520 = vadd.f32 0.0, %v1519
    %v1521 = vpop.f32.mrf.mxu0
    %v1522 = vpop.f32.mrf.mxu0
    %v1523 = vpop.f32.mrf.mxu0
    %1524 = vdwg.mxu0
    %v1525 = vadd.f32 %v1477, %v1520
    %v1526 = vxor.u32 %v1525, 2147483648
    %v1527 = vmul.f32 %v1526, 1.442695
    %v1528 = vpow.pop %v1527
    %v1529 = vadd.f32 %v1528, 1.0
    %v1530 = vrcp.pop %v1529
    %v1531 = vmul.f32 1.0, %v1530
    %v1532 = vtanh.pop %v1525
    %v1533 = vmul.f32 %v1531, %v1470
    %1535 = vrot.lane.b32.xlu0 %v1532, 32
    %v1536 = vpop.permute.xlu0 %1535
    %v1538 = vmul.f32 %v1531, %v1536
    %1540 = vrot.lane.b32.xlu0 %v1538, 32
    %v1541 = vpop.permute.xlu0 %1540
    %v1543 = vadd.f32 %v1533, %v1541
    %v1544 = vtanh.pop %v1543
    %1546 = vrot.lane.b32.xlu0 %v1544, 32
    %v1547 = vpop.permute.xlu0 %1546
    %v1549 = vmul.f32 %v1531, %v1547
    %v1550 = vld [vmem:[#allocation2 + $0x30] sm:$0xff]
    %v1551 = vpack.c.bf16 %v1549, %v1549
    %1553 = vrot.lane.b32.xlu0 %v1551, 64
    %v1554 = vpop.permute.xlu0 %1553
    %v1556 = vsel %vm228, %v1554, 0
    %1558 = vmatprep.subr.bf16.mxu0 0
    %1559 = vmatpush1.bf16.msra.mxu0 0
    %1560 = vmatprep.subr.bf16.mxu0 0
    %1561 = vmatpush1.bf16.msra.mxu0 0
    %1562 = vmatprep.subr.bf16.mxu0 0
    %1563 = vmatpush1.bf16.msra.mxu0 0
    %1564 = vmatprep.subr.bf16.mxu0 0
    %1565 = vmatpush1.bf16.msra.mxu0 0
    %1566 = vmatprep.subr.bf16.mxu0 0
    %1567 = vmatpush1.bf16.msra.mxu0 0
    %1568 = vmatprep.subr.bf16.mxu0 0
    %1569 = vmatpush1.bf16.msra.mxu0 0
    %1570 = vmatprep.subr.bf16.mxu0 0
    %1571 = vmatpush1.bf16.msra.mxu0 %v1117
    %1572 = vmatprep.subr.bf16.mxu0 0
    %1573 = vmatpush1.bf16.msra.mxu0 %v1116
    %1574 = vmatprep.subr.bf16.mxu0 0
    %1575 = vmatpush2.bf16.msra.mxu0 0
    %1576 = vmatprep.subr.bf16.mxu0 0
    %1577 = vmatpush2.bf16.msra.mxu0 0
    %1578 = vmatprep.subr.bf16.mxu0 0
    %1579 = vmatpush2.bf16.msra.mxu0 0
    %1580 = vmatprep.subr.bf16.mxu0 0
    %1581 = vmatpush2.bf16.msra.mxu0 0
    %1582 = vmatprep.subr.bf16.mxu0 0
    %1583 = vmatpush2.bf16.msra.mxu0 0
    %1584 = vmatprep.subr.bf16.mxu0 0
    %1585 = vmatpush2.bf16.msra.mxu0 0
    %1586 = vmatprep.subr.bf16.mxu0 0
    %1587 = vmatpush2.bf16.msra.mxu0 0
    %1588 = vmatprep.subr.bf16.mxu0 0
    %1589 = vmatpush2.bf16.msra.mxu0 0
    %1590 = vmatprep.mubr.bf16.mxu0 0
    %1591 = vmatmul.mubr.bf16.gmra.mxu0 %v1556
    %v1592 = vpop.f32.mrf.mxu0
    %v1593 = vadd.f32 0.0, %v1592
    %v1594 = vpop.f32.mrf.mxu0
    %v1595 = vpop.f32.mrf.mxu0
    %v1596 = vpop.f32.mrf.mxu0
    %1597 = vdwg.mxu0
    %v1598 = vadd.f32 %v1550, %v1593
    %v1599 = vxor.u32 %v1598, 2147483648
    %v1600 = vmul.f32 %v1599, 1.442695
    %v1601 = vpow.pop %v1600
    %v1602 = vadd.f32 %v1601, 1.0
    %v1603 = vrcp.pop %v1602
    %v1604 = vmul.f32 1.0, %v1603
    %v1605 = vtanh.pop %v1598
    %v1606 = vmul.f32 %v1604, %v1543
    %1608 = vrot.lane.b32.xlu0 %v1605, 32
    %v1609 = vpop.permute.xlu0 %1608
    %v1611 = vmul.f32 %v1604, %v1609
    %1613 = vrot.lane.b32.xlu0 %v1611, 32
    %v1614 = vpop.permute.xlu0 %1613
    %v1616 = vadd.f32 %v1606, %v1614
    %v1617 = vtanh.pop %v1616
    %1619 = vrot.lane.b32.xlu0 %v1617, 32
    %v1620 = vpop.permute.xlu0 %1619
    %v1622 = vmul.f32 %v1604, %v1620
    %v1623 = vld [vmem:[#allocation2 + $0x38] sm:$0xff]
    %v1624 = vpack.c.bf16 %v1622, %v1622
    %1626 = vrot.lane.b32.xlu0 %v1624, 64
    %v1627 = vpop.permute.xlu0 %1626
    %v1629 = vsel %vm228, %v1627, 0
    %1631 = vmatprep.subr.bf16.mxu0 0
    %1632 = vmatpush1.bf16.msra.mxu0 0
    %1633 = vmatprep.subr.bf16.mxu0 0
    %1634 = vmatpush1.bf16.msra.mxu0 0
    %1635 = vmatprep.subr.bf16.mxu0 0
    %1636 = vmatpush1.bf16.msra.mxu0 0
    %1637 = vmatprep.subr.bf16.mxu0 0
    %1638 = vmatpush1.bf16.msra.mxu0 0
    %1639 = vmatprep.subr.bf16.mxu0 0
    %1640 = vmatpush1.bf16.msra.mxu0 0
    %1641 = vmatprep.subr.bf16.mxu0 0
    %1642 = vmatpush1.bf16.msra.mxu0 0
    %1643 = vmatprep.subr.bf16.mxu0 0
    %1644 = vmatpush1.bf16.msra.mxu0 %v1117
    %1645 = vmatprep.subr.bf16.mxu0 0
    %1646 = vmatpush1.bf16.msra.mxu0 %v1116
    %1647 = vmatprep.subr.bf16.mxu0 0
    %1648 = vmatpush2.bf16.msra.mxu0 0
    %1649 = vmatprep.subr.bf16.mxu0 0
    %1650 = vmatpush2.bf16.msra.mxu0 0
    %1651 = vmatprep.subr.bf16.mxu0 0
    %1652 = vmatpush2.bf16.msra.mxu0 0
    %1653 = vmatprep.subr.bf16.mxu0 0
    %1654 = vmatpush2.bf16.msra.mxu0 0
    %1655 = vmatprep.subr.bf16.mxu0 0
    %1656 = vmatpush2.bf16.msra.mxu0 0
    %1657 = vmatprep.subr.bf16.mxu0 0
    %1658 = vmatpush2.bf16.msra.mxu0 0
    %1659 = vmatprep.subr.bf16.mxu0 0
    %1660 = vmatpush2.bf16.msra.mxu0 0
    %1661 = vmatprep.subr.bf16.mxu0 0
    %1662 = vmatpush2.bf16.msra.mxu0 0
    %1663 = vmatprep.mubr.bf16.mxu0 0
    %1664 = vmatmul.mubr.bf16.gmra.mxu0 %v1629
    %v1665 = vpop.f32.mrf.mxu0
    %v1666 = vadd.f32 0.0, %v1665
    %v1667 = vpop.f32.mrf.mxu0
    %v1668 = vpop.f32.mrf.mxu0
    %v1669 = vpop.f32.mrf.mxu0
    %1670 = vdwg.mxu0
    %v1671 = vadd.f32 %v1623, %v1666
    %v1672 = vxor.u32 %v1671, 2147483648
    %v1673 = vmul.f32 %v1672, 1.442695
    %v1674 = vpow.pop %v1673
    %v1675 = vadd.f32 %v1674, 1.0
    %v1676 = vrcp.pop %v1675
    %v1677 = vmul.f32 1.0, %v1676
    %v1678 = vtanh.pop %v1671
    %v1679 = vmul.f32 %v1677, %v1616
    %1681 = vrot.lane.b32.xlu0 %v1678, 32
    %v1682 = vpop.permute.xlu0 %1681
    %v1684 = vmul.f32 %v1677, %v1682
    %1686 = vrot.lane.b32.xlu0 %v1684, 32
    %v1687 = vpop.permute.xlu0 %1686
    %v1689 = vadd.f32 %v1679, %v1687
    %v1690 = vtanh.pop %v1689
    %1692 = vrot.lane.b32.xlu0 %v1690, 32
    %v1693 = vpop.permute.xlu0 %1692
    %v1695 = vmul.f32 %v1677, %v1693
    %1697 = vrot.lane.b32.xlu0 %v1695, 64
    %v1698 = vpop.permute.xlu0 %1697
    %s1700 = scalar_lea.vmem [#allocation10], 8
    %1701 = vst.msk [vmem:[%s1700] sm:$0xff] %vm228, %v1698
    %1703 = vrot.lane.b32.xlu0 %v1689, 96
    %v1704 = vpop.permute.xlu0 %1703
    %s1706 = scalar_lea.vmem [#allocation11], 8
    %1707 = vst.msk [vmem:[%s1706] sm:$0xff] %vm228, %v1704
    // Predicated region
    $region50: #{tpu_custom_call.1} parent=1 // pred_check
      _
    $region51: #{tpu_custom_call.1} parent=1 // pred_check_branch
      %1709 = sbr.rel (0) target = $region53
    $region52: #{tpu_custom_call.1} parent=1 // pred_region
      %s1711 = ssub.s32 256, 256
      %1712 = vsyncadd [#allocation6], %s1711
      %s1713 = sshll.u32 [#allocation10], 4
      %s1714 = int_to_ptr.vmem [resolvable:$true] %s1713
      %1719 = dma.vmem_to_hbm [thread:$0]  %s1714, 256, %s9, [#allocation6], 128, 128, 8
    $region53: #{tpu_custom_call.1} parent=1 // pred_fallthru
      _
    // Predicated region
    $region54: #{tpu_custom_call.1} parent=1 // pred_check
      _
    $region55: #{tpu_custom_call.1} parent=1 // pred_check_branch
      %1721 = sbr.rel (0) target = $region57
    $region56: #{tpu_custom_call.1} parent=1 // pred_region
      %s1723 = ssub.s32 256, 256
      %1724 = vsyncadd [#allocation12], %s1723
      %s1725 = sshll.u32 [#allocation11], 4
      %s1726 = int_to_ptr.vmem [resolvable:$true] %s1725
      %1731 = dma.vmem_to_hbm [thread:$0]  %s1726, 256, %s10, [#allocation12], 128, 128, 8
    $region57: #{tpu_custom_call.1} parent=1 // pred_fallthru
      _
    // Predicated region
    $region58: #{tpu_custom_call.1} parent=1 // pred_check
      _
    $region59: #{tpu_custom_call.1} parent=1 // pred_check_branch
      %1733 = sbr.rel (0) target = $region61
    $region60: #{tpu_custom_call.1} parent=1 // pred_region
      %1734 = dma.done [#allocation6], 256
    $region61: #{tpu_custom_call.1} parent=1 // pred_fallthru
      _
    // Predicated region
    $region62: #{tpu_custom_call.1} parent=1 // pred_check
      _
    $region63: #{tpu_custom_call.1} parent=1 // pred_check_branch
      %1736 = sbr.rel (0) target = $region65
    $region64: #{tpu_custom_call.1} parent=1 // pred_region
      %1737 = dma.done [#allocation12], 256
    $region65: #{tpu_custom_call.1} parent=1 // pred_fallthru
      _
    %1738 = vsyncpa [#allocation5], 1
    %1739 = vsyncpa [#allocation8], 1
    %1740 = vsyncpa [#allocation6], 1
    %1741 = vsyncpa [#allocation12], 1

</llo_original>
